<compile_context>
chip_gen: v7x
topology: tpu7x:2x2x1
jax: 0.10.0
libtpu: 0.0.40
codegen_flags: <defaults>
</compile_context>

<pallas_src>
import functools
import math

import numpy as np
import jax
import jax.numpy as jnp
from jax.experimental import pallas as pl
from jax.experimental.pallas import tpu as pltpu


def _round_up(n, m):
    return ((n + m - 1) // m) * m


# --------------------------------------------------------------------------
# Pallas kernel: one grid step handles TM = TB*P rows (TB whole graph
# instances of P persons each), so the softmax segmentation never straddles a
# tile and every matmul sees a large M.
# --------------------------------------------------------------------------
def _reactive_gru_kernel(P, E, A, H, offs,
                         x_ref, hprev_ref, w_ref, misc_ref, out_ref):
    f32, bf16 = jnp.float32, jnp.bfloat16
    EH, EA = E * H, E * A
    N_in = 2 * EA + 2 * H
    K_in = x_ref.shape[1]
    TM = x_ref.shape[0]
    TB = TM // P                      # graph instances in this tile
    OUT_W = out_ref.shape[1]
    PGpad = OUT_W - H
    o_in, o_seg, o_exp, o_col, o_gru, o_hhn, o_pg = offs

    def bdot(x, w):                   # bf16 MXU operands, f32 accumulation
        return jnp.dot(x.astype(bf16), w, preferred_element_type=f32)

    x = x_ref[...]                    # (TM, EH+H+idim) = [sp_flat | temp_h | feature]
    hprev = hprev_ref[...]            # (TM, H)
    misc = misc_ref[...]              # (8, 192) f32: BN rows + every bias row

    # ---- ONE fused block-diagonal input matmul --------------------------------
    #   out columns: [s_pe (EA) | t_embed tiled E times (EA) | hea (H) | fe (H)]
    #   bn_hidden / bn_hidden2 / bn_feature folded into weight + bias row.
    tmp = bdot(x, w_ref[o_in:o_in + K_in, :N_in]) + misc[2:3, :N_in]
    s_pe = tmp[:, :EA]
    t_til = tmp[:, EA:2 * EA]
    hea = tmp[:, 2 * EA:2 * EA + H]
    fe_pre = tmp[:, 2 * EA + H:N_in]

    # ---- attention scores via a segment-sum matmul (temperature folded) -------
    scores = bdot(s_pe * t_til, w_ref[o_seg:o_seg + EA, :E])        # (TM, E)

    # ---- softmax over the P persons of each instance, per edge ----------------
    sc3 = scores.reshape(TB, P, E)                                   # P == sublane tile
    m = jnp.max(sc3, axis=1, keepdims=True)
    ev = jnp.exp(sc3 - m)
    den = jnp.sum(ev, axis=1, keepdims=True)
    w_att = (ev * pl.reciprocal(den, approx=True)).reshape(TM, E)

    # ---- weighted person-sum, folded straight through hidden_embed[:, H:] -----
    sp_bn = x[:, :EH] * misc[0:1, :EH] + misc[1:2, :EH]              # bn_hidden (.view layout)
    w_exp = bdot(w_att, w_ref[o_exp:o_exp + E, :EH])                 # (TM, EH) per-edge broadcast
    he_att = bdot(w_exp * sp_bn, w_ref[o_col:o_col + EH, :H])        # (TM, H)

    f_e = jnp.maximum(fe_pre, 0.0)
    h_e = jnp.maximum(hea + he_att, 0.0)

    # ---- TanhGRU cell: one fused (TM,3H)@(3H,3H) gate matmul -------------------
    x_cat = jnp.concatenate([f_e, h_e, hprev], axis=-1)              # (TM, 3H)
    gates = bdot(x_cat, w_ref[o_gru:o_gru + 3 * H, :3 * H]) + misc[3:4, :3 * H]
    z = jax.nn.sigmoid(gates[:, :H])
    r = jax.nn.sigmoid(gates[:, H:2 * H])
    n = jnp.tanh(gates[:, 2 * H:3 * H]
                 + bdot(hprev * r, w_ref[o_hhn:o_hhn + H, :H]))
    hidden = (1.0 - z) * n + z * hprev

    # ---- fused heads; ONE lane-dense (TM, 128) output slab ---------------------
    pg = bdot(hidden, w_ref[o_pg:o_pg + H, :PGpad]) + misc[4:5, :PGpad]
    out_ref[...] = jnp.concatenate([hidden, pg], axis=-1)


# --------------------------------------------------------------------------
# Raw parameters (deterministic, mirrors ReactiveGRU.__init__ / init_weights)
# --------------------------------------------------------------------------
def make_params(key, input_dim, hidden_dim, atten_dim, pout_dim, gout_dim):
    H, A = hidden_dim, atten_dim
    r = float(np.sqrt(1.0 / H))
    ks = jax.random.split(key, 10)
    u = lambda k, shape: jax.random.uniform(k, shape, jnp.float32, -r, r)

    params = dict(
        wt=u(ks[0], (A, H)), bt=u(ks[1], (A,)),          # attn.temporal_edge_layer
        ws=u(ks[2], (A, H)), bs=u(ks[3], (A,)),          # attn.spatial_edge_layer
        wfe=u(ks[4], (H, input_dim)),                    # feature_embed (no bias)
        whe=u(ks[5], (H, 2 * H)),                        # hidden_embed  (no bias)
        wih=u(ks[6], (3, H, 2 * H)),                     # gru.weight_ih
        whh=u(ks[7], (3, H, H)),                         # gru.weight_hh
        gbias=jnp.zeros((3, H), jnp.float32),            # gru.bias (zeroed)
        wp=u(ks[8], (pout_dim, H)), bp=jnp.zeros((pout_dim,), jnp.float32),
        wg=u(ks[9], (gout_dim, H)), bg=jnp.zeros((gout_dim,), jnp.float32),
    )

    # BatchNorm1d defaults: gamma=1, beta=0, running_mean=0, running_var=1
    eps = 1e-5
    def bn(dim):
        gamma = jnp.ones((dim,), jnp.float32)
        beta = jnp.zeros((dim,), jnp.float32)
        mean = jnp.zeros((dim,), jnp.float32)
        var = jnp.ones((dim,), jnp.float32)
        scale = gamma / jnp.sqrt(var + eps)
        shift = beta - mean * scale
        return scale, shift

    params["bnh"] = bn(H)          # attn.bn_hidden
    params["bnf"] = bn(input_dim)  # bn_feature
    params["bn1"] = bn(H)          # bn_hidden1
    params["bn2"] = bn(2 * H)      # bn_hidden2
    return params


# --------------------------------------------------------------------------
# One-time parameter preparation: BN folding, matmul fusion, slab packing.
# --------------------------------------------------------------------------
def prepare_params(params, num_edges, w_dtype=jnp.bfloat16):
    E = num_edges
    bnh_sc, bnh_sh = params["bnh"]
    bnf_sc, bnf_sh = params["bnf"]
    bn1_sc, bn1_sh = params["bn1"]
    bn2_sc, bn2_sh = params["bn2"]
    wt, bt = params["wt"], params["bt"]
    ws, bs = params["ws"], params["bs"]
    wfe, whe = params["wfe"], params["whe"]
    wih, whh, gb = params["wih"], params["whh"], params["gbias"]
    wp, bp = params["wp"], params["bp"]
    wg, bg = params["wg"], params["bg"]

    A, H = wt.shape
    idim = wfe.shape[1]
    pout, gout = wp.shape[0], wg.shape[0]
    EH, EA = E * H, E * A
    PG = pout + gout
    OUT_W = _round_up(H + PG, 128)     # lane-dense output slab width
    PGpad = OUT_W - H

    # ---- BatchNorm folding ------------------------------------------------
    wt_fold = bnh_sc[:, None] * wt.T                    # (H, A)   bn_hidden -> temporal edge
    bt_fold = bnh_sh @ wt.T + bt                        # (A,)
    whe_a = bn2_sc[:H, None] * whe[:, :H].T             # (H, H)   bn_hidden2 (temp half)
    whe_b = bn2_sc[H:, None] * whe[:, H:].T             # (H, H)   bn_hidden2 (attn half)
    bhe = bn2_sh @ whe.T                                # (H,)
    wfe_fold = bnf_sc[:, None] * wfe.T                  # (idim, H) bn_feature
    bfe = bnf_sh @ wfe.T                                # (H,)

    # bn_hidden stats routed through torch's raw .view(P, E, H): the viewed
    # flat column j carries the stats of channel j // E.
    ch = jnp.arange(EH) // E
    sc_v, sh_v = bnh_sc[ch], bnh_sh[ch]                 # (EH,)

    # block-diagonal spatial edge layer in the flat (*, EH) layout, bn folded
    wsd = jnp.kron(jnp.eye(E, dtype=ws.dtype), ws.T)    # (EH, EA)
    wsd_fold = sc_v[:, None] * wsd
    bs_fold = sh_v @ wsd + jnp.tile(bs, E)              # (EA,)

    # ---- single fused input weight ------------------------------------------
    # LHS columns: [sp_flat (EH) | temp_h (H) | feature (idim)]
    # out columns: [s_pe (EA) | t_embed tiled (EA) | hea (H) | fe_pre (H)]
    K_in = EH + H + idim
    N_in = 2 * EA + 2 * H
    w_in = jnp.zeros((K_in, N_in), jnp.float32)
    w_in = w_in.at[:EH, :EA].set(wsd_fold)
    w_in = w_in.at[EH:EH + H, EA:2 * EA].set(jnp.tile(wt_fold, (1, E)))
    w_in = w_in.at[EH:EH + H, 2 * EA:2 * EA + H].set(whe_a)
    w_in = w_in.at[EH + H:, 2 * EA + H:].set(wfe_fold)
    b_in = jnp.concatenate([bs_fold, jnp.tile(bt_fold, E), bhe, bfe])  # (N_in,)

    # attention segment-sum (scores) with the softmax temperature folded in
    temperature = E / math.sqrt(A)
    seg_sum = jnp.kron(jnp.eye(E, dtype=jnp.float32),
                       jnp.ones((A, 1), jnp.float32)) * temperature    # (EA, E)
    # per-edge broadcast of attention weights: (E, EH) 0/1 indicator
    w_expand = jnp.kron(jnp.eye(E, dtype=jnp.float32),
                        jnp.ones((1, H), jnp.float32))                 # (E, EH)
    # weighted person-sum collapsed straight through hidden_embed[:, H:]
    w_col = jnp.tile(whe_b, (E, 1))                                    # (EH, H)

    # fused GRU gate weight: X = [f_e | h_e | hprev] -> [z | r | n_x]
    wihT = jnp.transpose(wih, (0, 2, 1))                               # (3, 2H, H)
    whhT = jnp.transpose(whh, (0, 2, 1))                               # (3, H, H)
    top = jnp.concatenate([wihT[0], wihT[1], wihT[2]], axis=1)         # (2H, 3H)
    bot = jnp.concatenate([whhT[0], whhT[1],
                           jnp.zeros((H, H), jnp.float32)], axis=1)    # (H, 3H)
    w_gru = jnp.concatenate([top, bot], axis=0)                        # (3H, 3H)
    whh_n = whhT[2]                                                    # (H, H)
    gb_all = gb.reshape(-1)                                            # (3H,)

    # fused prediction heads with bn_hidden1 folded, lane-padded so the kernel
    # emits one OUT_W-wide slab [hidden | pact | gact | 0]
    wpg = jnp.zeros((H, PGpad), jnp.float32)
    wpg = wpg.at[:, :pout].set(bn1_sc[:, None] * wp.T)
    wpg = wpg.at[:, pout:PG].set(bn1_sc[:, None] * wg.T)
    bpg = jnp.zeros((PGpad,), jnp.float32)
    bpg = bpg.at[:pout].set(bn1_sh @ wp.T + bp)
    bpg = bpg.at[pout:PG].set(bn1_sh @ wg.T + bg)

    # ---- pack ALL weights into ONE bf16 slab (16-row aligned blocks) ---------
    blocks = [w_in, seg_sum, w_expand, w_col, w_gru, whh_n, wpg]
    width = max(b.shape[1] for b in blocks)
    offs, rows = [], 0
    for b in blocks:
        offs.append(rows)
        rows += _round_up(b.shape[0], 16)   # bf16 sublane-tile alignment
    slab = jnp.zeros((rows, width), jnp.float32)
    for off, b in zip(offs, blocks):
        slab = slab.at[off:off + b.shape[0], :b.shape[1]].set(b)

    # ---- pack all f32 scalar rows (BN view scale/shift + every bias) ---------
    misc = jnp.zeros((8, width), jnp.float32)
    misc = misc.at[0, :EH].set(sc_v)
    misc = misc.at[1, :EH].set(sh_v)
    misc = misc.at[2, :N_in].set(b_in)
    misc = misc.at[3, :3 * H].set(gb_all)
    misc = misc.at[4, :PGpad].set(bpg)

    return dict(
        E=E, A=A, H=H, idim=idim, pout=pout, gout=gout, out_w=OUT_W,
        offs=tuple(int(o) for o in offs),
        w_slab=slab.astype(w_dtype), misc=misc,
    )


# --------------------------------------------------------------------------
# Per-call wrapper.  Inputs are batched over B independent graph instances:
#   feature (B,P,idim), temp_hidden (B,P,H), spat_hidden (B,P,H,E),
#   prev_hidden (B,P,H).  Wrapper work is layout plumbing only.
# --------------------------------------------------------------------------
def reactive_gru_forward(prep, feature, temp_hidden, spat_hidden, prev_hidden):
    E, A, H = prep["E"], prep["A"], prep["H"]
    idim, pout, gout = prep["idim"], prep["pout"], prep["gout"]
    OUT_W = prep["out_w"]
    EH, EA = E * H, E * A
    B, P, _ = temp_hidden.shape
    assert feature.shape == (B, P, idim)
    assert spat_hidden.shape == (B, P, H, E)
    assert prev_hidden.shape == (B, P, H)
    assert E > 1  # TODO(synk): num_edges==1 torch.dot attention branch unsupported.

    M = B * P
    K_in = EH + H + idim
    N_in = 2 * EA + 2 * H
    PGpad = OUT_W - H

    # torch applies bn_hidden to (P,H,E) then raw-.view(P,E,H); the contiguous
    # reshape to (*, E*H) is exact.  Present ONE activation input so the kernel
    # issues a single fused input matmul and a single activation DMA per tile.
    sp_flat = spat_hidden.reshape(B, P, EH)
    x_in = jnp.concatenate([sp_flat, temp_hidden, feature], axis=-1).reshape(M, K_in)
    hprev = prev_hidden.reshape(M, H)

    # Rows per tile: largest multiple of P (whole instances -> softmax never
    # straddles a tile) and of 8 (sublane) dividing M, capped at 128 so the
    # batch grid spreads across v7x's two TensorCores.
    TM = M
    for t in range(P, min(M, 128) + 1, P):
        if M % t == 0 and t % 8 == 0:
            TM = t
    grid = (M // TM,)

    flops = 2 * M * (K_in * N_in + EA * E + E * EH + EH * H
                     + (3 * H) * (3 * H) + H * H + H * PGpad)
    transcendentals = M * (4 * H + 2 * E)
    bytes_accessed = (x_in.size + hprev.size + M * OUT_W + prep["misc"].size) * 4 \
        + prep["w_slab"].size * 2

    kernel = functools.partial(_reactive_gru_kernel, P, E, A, H, prep["offs"])
    out = pl.pallas_call(
        kernel,
        out_shape=jax.ShapeDtypeStruct((M, OUT_W), jnp.float32),
        grid=grid,
        in_specs=[
            pl.BlockSpec((TM, K_in), lambda i: (i, 0)),
            pl.BlockSpec((TM, H), lambda i: (i, 0)),
            pl.BlockSpec(prep["w_slab"].shape, lambda i: (0, 0)),  # weights stay resident
            pl.BlockSpec(prep["misc"].shape, lambda i: (0, 0)),
        ],
        out_specs=pl.BlockSpec((TM, OUT_W), lambda i: (i, 0)),
        compiler_params=pltpu.CompilerParams(
            dimension_semantics=("parallel",),
            vmem_limit_bytes=32 * 1024 * 1024),
        cost_estimate=pl.CostEstimate(
            flops=int(flops), transcendentals=int(transcendentals),
            bytes_accessed=int(bytes_accessed)),
    )(x_in, hprev, prep["w_slab"], prep["misc"])

    out = out.reshape(B, P, OUT_W)
    hidden = out[..., :H]
    pact = out[..., H:H + pout]
    gact = out[..., H + pout:H + pout + gout]
    return pact, gact, hidden


# --------------------------------------------------------------------------
# NumPy float64 reference (direct transcription of the torch forward, eval),
# applied per instance and stacked over the batch.
# --------------------------------------------------------------------------
def _np(x):
    return np.asarray(x, dtype=np.float64)


def reference_forward(params, feature, temp_hidden, spat_hidden, prev_hidden):
    def one(feat, th, sh, ph):
        feat, th, sh, ph = _np(feat), _np(th), _np(sh), _np(ph)
        Pn, H = th.shape
        E = sh.shape[-1]
        A = params["wt"].shape[0]

        bnh_sc, bnh_sh = map(_np, params["bnh"])
        th_bn = th * bnh_sc + bnh_sh
        t_embed = (th_bn @ _np(params["wt"]).T + _np(params["bt"])).reshape(Pn, A, 1)
        sp_bn = sh * bnh_sc[None, :, None] + bnh_sh[None, :, None]
        sp_view = sp_bn.reshape(Pn, E, H)                 # torch .view semantics
        s_embed = sp_view @ _np(params["ws"]).T + _np(params["bs"])
        attn = np.matmul(s_embed, t_embed) * (E / np.sqrt(A))
        ex = np.exp(attn - attn.max(axis=0, keepdims=True))
        weighted = ex / ex.sum(axis=0, keepdims=True)     # softmax over persons
        Hatt = np.matmul(np.transpose(sp_view, (0, 2, 1)), weighted).reshape(Pn, H)

        bnf_sc, bnf_sh = map(_np, params["bnf"])
        f_e = np.maximum((feat * bnf_sc + bnf_sh) @ _np(params["wfe"]).T, 0.0)
        cat_H = np.concatenate([th, Hatt], axis=-1)
        bn2_sc, bn2_sh = map(_np, params["bn2"])
        h_e = np.maximum((cat_H * bn2_sc + bn2_sh) @ _np(params["whe"]).T, 0.0)
        cat = np.concatenate([f_e, h_e], axis=-1)

        wih, whh, gb = _np(params["wih"]), _np(params["whh"]), _np(params["gbias"])
        sig = lambda v: 1.0 / (1.0 + np.exp(-v))
        z = sig(cat @ wih[0].T + ph @ whh[0].T + gb[0])
        r = sig(cat @ wih[1].T + ph @ whh[1].T + gb[1])
        n = np.tanh(cat @ wih[2].T + (ph * r) @ whh[2].T + gb[2])
        hidden = (1.0 - z) * n + z * ph

        bn1_sc, bn1_sh = map(_np, params["bn1"])
        hb = hidden * bn1_sc + bn1_sh
        pa = hb @ _np(params["wp"]).T + _np(params["bp"])
        ga = hb @ _np(params["wg"]).T + _np(params["bg"])
        return pa, ga, hidden

    B = feature.shape[0]
    outs = [one(feature[b], temp_hidden[b], spat_hidden[b], prev_hidden[b])
            for b in range(B)]
    pa = np.stack([o[0] for o in outs])
    ga = np.stack([o[1] for o in outs])
    hi = np.stack([o[2] for o in outs])
    return pa, ga, hi


if __name__ == "__main__":
    B, P, E = 32, 8, 4                # graph instances, persons, spatial edges
    input_dim, hidden_dim, atten_dim = 24, 32, 16
    pout_dim, gout_dim = 9, 8

    key = jax.random.PRNGKey(0)
    kp, kf, kt, ks, kh = jax.random.split(key, 5)
    params = make_params(kp, input_dim, hidden_dim, atten_dim, pout_dim, gout_dim)
    prep = prepare_params(params, num_edges=E)   # one-time folding/fusion/packing

    feature = jax.random.normal(kf, (B, P, input_dim), jnp.float32)
    temp_hidden = jax.random.normal(kt, (B, P, hidden_dim), jnp.float32)
    spat_hidden = jax.random.normal(ks, (B, P, hidden_dim, E), jnp.float32)
    prev_hidden = jax.random.normal(kh, (B, P, hidden_dim), jnp.float32)

    pact, gact, hidden = jax.block_until_ready(
        reactive_gru_forward(prep, feature, temp_hidden, spat_hidden, prev_hidden)
    )

    rp, rg, rh = reference_forward(params, feature, temp_hidden, spat_hidden,
                                   prev_hidden)
    # Tolerance absorbs bf16 MXU operand rounding along the fused chain plus the
    # approx-reciprocal softmax (pure-f32 build matches to ~1e-5).
    np.testing.assert_allclose(np.asarray(pact), rp, atol=4e-2, rtol=4e-2)
    np.testing.assert_allclose(np.asarray(gact), rg, atol=4e-2, rtol=4e-2)
    np.testing.assert_allclose(np.asarray(hidden), rh, atol=4e-2, rtol=4e-2)
    print("KERNEL_OK")
</pallas_src>

<mosaic_0001>
module attributes {stable_mosaic.version = 11 : i64} {
  func.func @_reactive_gru_kernel(%arg0: i32, %arg1: memref<128x184xf32, #tpu.memory_space<vmem>>, %arg2: memref<128x32xf32, #tpu.memory_space<vmem>>, %arg3: memref<560x192xbf16, #tpu.memory_space<vmem>>, %arg4: memref<8x192xf32, #tpu.memory_space<vmem>>, %arg5: memref<128x128xf32, #tpu.memory_space<vmem>>) attributes {dimension_semantics = [#tpu.dimension_semantics<parallel>], iteration_bounds = array<i64: 2>, scalar_prefetch = 0 : i64, scratch_operands = 0 : i64, tpu.core_type = #tpu.core_type<tc>, window_params = [{transform_indices = @transform_0, window_bounds = array<i64: 128, 184>}, {transform_indices = @transform_1, window_bounds = array<i64: 128, 32>}, {pipeline_mode = #tpu.pipeline_mode<synchronous>, transform_indices = @transform_2, window_bounds = array<i64: 560, 192>}, {pipeline_mode = #tpu.pipeline_mode<synchronous>, transform_indices = @transform_3, window_bounds = array<i64: 8, 192>}, {transform_indices = @transform_4, window_bounds = array<i64: 128, 128>}]} {
    %c0 = arith.constant 0 : index
    %c0_0 = arith.constant 0 : index
    %0 = vector.load %arg1[%c0, %c0_0] : memref<128x184xf32, #tpu.memory_space<vmem>>, vector<128x184xf32>
    %c0_1 = arith.constant 0 : index
    %c0_2 = arith.constant 0 : index
    %1 = vector.load %arg2[%c0_1, %c0_2] : memref<128x32xf32, #tpu.memory_space<vmem>>, vector<128x32xf32>
    %c0_3 = arith.constant 0 : index
    %c0_4 = arith.constant 0 : index
    %2 = vector.load %arg4[%c0_3, %c0_4] : memref<8x192xf32, #tpu.memory_space<vmem>>, vector<8x192xf32>
    %c0_5 = arith.constant 0 : index
    %c0_6 = arith.constant 0 : index
    %3 = vector.load %arg3[%c0_5, %c0_6] : memref<560x192xbf16, #tpu.memory_space<vmem>>, vector<184x192xbf16>
    %4 = arith.truncf %0 : vector<128x184xf32> to vector<128x184xbf16>
    %cst = arith.constant dense<0.000000e+00> : vector<128x192xf32>
    %5 = tpu.matmul %4, %3, %cst {dimension_numbers = #tpu.dot_dimension_numbers<[1], [0], [0], [1], [0, 0, 1, 1], [], []>} : vector<128x184xbf16>, vector<184x192xbf16>, vector<128x192xf32> -> vector<128x192xf32>
    %6 = vector.extract_strided_slice %2 {offsets = [2, 0], sizes = [1, 192], strides = [1, 1]} : vector<8x192xf32> to vector<1x192xf32>
    %7 = vector.broadcast %6 : vector<1x192xf32> to vector<128x192xf32>
    %8 = arith.addf %5, %7 : vector<128x192xf32>
    %9 = vector.extract_strided_slice %8 {offsets = [0, 0], sizes = [128, 64], strides = [1, 1]} : vector<128x192xf32> to vector<128x64xf32>
    %10 = vector.extract_strided_slice %8 {offsets = [0, 64], sizes = [128, 64], strides = [1, 1]} : vector<128x192xf32> to vector<128x64xf32>
    %11 = vector.extract_strided_slice %8 {offsets = [0, 128], sizes = [128, 32], strides = [1, 1]} : vector<128x192xf32> to vector<128x32xf32>
    %12 = vector.extract_strided_slice %8 {offsets = [0, 160], sizes = [128, 32], strides = [1, 1]} : vector<128x192xf32> to vector<128x32xf32>
    %13 = arith.mulf %9, %10 : vector<128x64xf32>
    %c192 = arith.constant 192 : index
    %c0_7 = arith.constant 0 : index
    %14 = vector.load %arg3[%c192, %c0_7] : memref<560x192xbf16, #tpu.memory_space<vmem>>, vector<64x4xbf16>
    %15 = arith.truncf %13 : vector<128x64xf32> to vector<128x64xbf16>
    %cst_8 = arith.constant dense<0.000000e+00> : vector<128x4xf32>
    %16 = tpu.matmul %15, %14, %cst_8 {dimension_numbers = #tpu.dot_dimension_numbers<[1], [0], [0], [1], [0, 0, 1, 1], [], []>} : vector<128x64xbf16>, vector<64x4xbf16>, vector<128x4xf32> -> vector<128x4xf32>
    %17 = vector.shape_cast %16 : vector<128x4xf32> to vector<16x8x4xf32>
    %cst_9 = arith.constant dense<0xFF800000> : vector<16x4xf32>
    %18 = vector.multi_reduction <maximumf>, %17, %cst_9 [1] : vector<16x8x4xf32> to vector<16x4xf32>
    %19 = vector.shape_cast %18 : vector<16x4xf32> to vector<16x1x4xf32>
    %20 = vector.broadcast %19 : vector<16x1x4xf32> to vector<16x8x4xf32>
    %21 = arith.subf %17, %20 : vector<16x8x4xf32>
    %22 = math.exp %21 : vector<16x8x4xf32>
    %cst_10 = arith.constant dense<0.000000e+00> : vector<16x4xf32>
    %23 = vector.multi_reduction <add>, %22, %cst_10 [1] : vector<16x8x4xf32> to vector<16x4xf32>
    %24 = vector.shape_cast %23 : vector<16x4xf32> to vector<16x1x4xf32>
    %25 = tpu.reciprocal %24 {approx = true} : vector<16x1x4xf32> -> vector<16x1x4xf32>
    %26 = vector.broadcast %25 : vector<16x1x4xf32> to vector<16x8x4xf32>
    %27 = arith.mulf %22, %26 : vector<16x8x4xf32>
    %28 = vector.shape_cast %27 : vector<16x8x4xf32> to vector<128x4xf32>
    %29 = vector.extract_strided_slice %0 {offsets = [0, 0], sizes = [128, 128], strides = [1, 1]} : vector<128x184xf32> to vector<128x128xf32>
    %30 = vector.extract_strided_slice %2 {offsets = [0, 0], sizes = [1, 128], strides = [1, 1]} : vector<8x192xf32> to vector<1x128xf32>
    %31 = vector.broadcast %30 : vector<1x128xf32> to vector<128x128xf32>
    %32 = arith.mulf %29, %31 : vector<128x128xf32>
    %33 = vector.extract_strided_slice %2 {offsets = [1, 0], sizes = [1, 128], strides = [1, 1]} : vector<8x192xf32> to vector<1x128xf32>
    %34 = vector.broadcast %33 : vector<1x128xf32> to vector<128x128xf32>
    %35 = arith.addf %32, %34 : vector<128x128xf32>
    %c256 = arith.constant 256 : index
    %c0_11 = arith.constant 0 : index
    %36 = vector.load %arg3[%c256, %c0_11] : memref<560x192xbf16, #tpu.memory_space<vmem>>, vector<4x128xbf16>
    %37 = arith.truncf %28 : vector<128x4xf32> to vector<128x4xbf16>
    %cst_12 = arith.constant dense<0.000000e+00> : vector<128x128xf32>
    %38 = tpu.matmul %37, %36, %cst_12 {dimension_numbers = #tpu.dot_dimension_numbers<[1], [0], [0], [1], [0, 0, 1, 1], [], []>} : vector<128x4xbf16>, vector<4x128xbf16>, vector<128x128xf32> -> vector<128x128xf32>
    %39 = arith.mulf %38, %35 : vector<128x128xf32>
    %c272 = arith.constant 272 : index
    %c0_13 = arith.constant 0 : index
    %40 = vector.load %arg3[%c272, %c0_13] : memref<560x192xbf16, #tpu.memory_space<vmem>>, vector<128x32xbf16>
    %41 = arith.truncf %39 : vector<128x128xf32> to vector<128x128xbf16>
    %cst_14 = arith.constant dense<0.000000e+00> : vector<128x32xf32>
    %42 = tpu.matmul %41, %40, %cst_14 {dimension_numbers = #tpu.dot_dimension_numbers<[1], [0], [0], [1], [0, 0, 1, 1], [], []>} : vector<128x128xbf16>, vector<128x32xbf16>, vector<128x32xf32> -> vector<128x32xf32>
    %cst_15 = arith.constant 0.000000e+00 : f32
    %43 = vector.broadcast %cst_15 : f32 to vector<128x32xf32>
    %44 = arith.maximumf %12, %43 : vector<128x32xf32>
    %45 = arith.addf %11, %42 : vector<128x32xf32>
    %cst_16 = arith.constant 0.000000e+00 : f32
    %46 = vector.broadcast %cst_16 : f32 to vector<128x32xf32>
    %47 = arith.maximumf %45, %46 : vector<128x32xf32>
    %48 = tpu.concatenate %44, %47, %1 in 1 : vector<128x32xf32>, vector<128x32xf32>, vector<128x32xf32> -> vector<128x96xf32>
    %c400 = arith.constant 400 : index
    %c0_17 = arith.constant 0 : index
    %49 = vector.load %arg3[%c400, %c0_17] : memref<560x192xbf16, #tpu.memory_space<vmem>>, vector<96x96xbf16>
    %50 = arith.truncf %48 : vector<128x96xf32> to vector<128x96xbf16>
    %cst_18 = arith.constant dense<0.000000e+00> : vector<128x96xf32>
    %51 = tpu.matmul %50, %49, %cst_18 {dimension_numbers = #tpu.dot_dimension_numbers<[1], [0], [0], [1], [0, 0, 1, 1], [], []>} : vector<128x96xbf16>, vector<96x96xbf16>, vector<128x96xf32> -> vector<128x96xf32>
    %52 = vector.extract_strided_slice %2 {offsets = [3, 0], sizes = [1, 96], strides = [1, 1]} : vector<8x192xf32> to vector<1x96xf32>
    %53 = vector.broadcast %52 : vector<1x96xf32> to vector<128x96xf32>
    %54 = arith.addf %51, %53 : vector<128x96xf32>
    %55 = vector.extract_strided_slice %54 {offsets = [0, 0], sizes = [128, 32], strides = [1, 1]} : vector<128x96xf32> to vector<128x32xf32>
    %56 = arith.negf %55 : vector<128x32xf32>
    %57 = math.exp %56 : vector<128x32xf32>
    %cst_19 = arith.constant 1.000000e+00 : f32
    %58 = vector.broadcast %cst_19 : f32 to vector<128x32xf32>
    %59 = arith.addf %58, %57 : vector<128x32xf32>
    %60 = arith.divf %58, %59 : vector<128x32xf32>
    %61 = vector.extract_strided_slice %54 {offsets = [0, 32], sizes = [128, 32], strides = [1, 1]} : vector<128x96xf32> to vector<128x32xf32>
    %62 = arith.negf %61 : vector<128x32xf32>
    %63 = math.exp %62 : vector<128x32xf32>
    %cst_20 = arith.constant 1.000000e+00 : f32
    %64 = vector.broadcast %cst_20 : f32 to vector<128x32xf32>
    %65 = arith.addf %64, %63 : vector<128x32xf32>
    %66 = arith.divf %64, %65 : vector<128x32xf32>
    %67 = vector.extract_strided_slice %54 {offsets = [0, 64], sizes = [128, 32], strides = [1, 1]} : vector<128x96xf32> to vector<128x32xf32>
    %68 = arith.mulf %1, %66 : vector<128x32xf32>
    %c496 = arith.constant 496 : index
    %c0_21 = arith.constant 0 : index
    %69 = vector.load %arg3[%c496, %c0_21] : memref<560x192xbf16, #tpu.memory_space<vmem>>, vector<32x32xbf16>
    %70 = arith.truncf %68 : vector<128x32xf32> to vector<128x32xbf16>
    %cst_22 = arith.constant dense<0.000000e+00> : vector<128x32xf32>
    %71 = tpu.matmul %70, %69, %cst_22 {dimension_numbers = #tpu.dot_dimension_numbers<[1], [0], [0], [1], [0, 0, 1, 1], [], []>} : vector<128x32xbf16>, vector<32x32xbf16>, vector<128x32xf32> -> vector<128x32xf32>
    %72 = arith.addf %67, %71 : vector<128x32xf32>
    %73 = math.tanh %72 : vector<128x32xf32>
    %cst_23 = arith.constant 1.000000e+00 : f32
    %74 = vector.broadcast %cst_23 : f32 to vector<128x32xf32>
    %75 = arith.subf %74, %60 : vector<128x32xf32>
    %76 = arith.mulf %75, %73 : vector<128x32xf32>
    %77 = arith.mulf %60, %1 : vector<128x32xf32>
    %78 = arith.addf %76, %77 : vector<128x32xf32>
    %c528 = arith.constant 528 : index
    %c0_24 = arith.constant 0 : index
    %79 = vector.load %arg3[%c528, %c0_24] : memref<560x192xbf16, #tpu.memory_space<vmem>>, vector<32x96xbf16>
    %80 = arith.truncf %78 : vector<128x32xf32> to vector<128x32xbf16>
    %cst_25 = arith.constant dense<0.000000e+00> : vector<128x96xf32>
    %81 = tpu.matmul %80, %79, %cst_25 {dimension_numbers = #tpu.dot_dimension_numbers<[1], [0], [0], [1], [0, 0, 1, 1], [], []>} : vector<128x32xbf16>, vector<32x96xbf16>, vector<128x96xf32> -> vector<128x96xf32>
    %82 = vector.extract_strided_slice %2 {offsets = [4, 0], sizes = [1, 96], strides = [1, 1]} : vector<8x192xf32> to vector<1x96xf32>
    %83 = vector.broadcast %82 : vector<1x96xf32> to vector<128x96xf32>
    %84 = arith.addf %81, %83 : vector<128x96xf32>
    %85 = tpu.concatenate %78, %84 in 1 : vector<128x32xf32>, vector<128x96xf32> -> vector<128x128xf32>
    %c0_26 = arith.constant 0 : index
    %c0_27 = arith.constant 0 : index
    %86 = vector.load %arg5[%c0_26, %c0_27] : memref<128x128xf32, #tpu.memory_space<vmem>>, vector<128x128xf32>
    tpu.vector_store %arg5[%c0_26, %c0_27], %85 {strides = array<i32>} : memref<128x128xf32, #tpu.memory_space<vmem>>, vector<128x128xf32>,
    return
  }
  func.func @transform_0(%arg0: i32) -> (i32, i32) {
    %c0_i32 = arith.constant 0 : i32
    %c0_i32_0 = arith.constant 0 : i32
    return %arg0, %c0_i32 : i32, i32
  }
  func.func @transform_1(%arg0: i32) -> (i32, i32) {
    %c0_i32 = arith.constant 0 : i32
    %c0_i32_0 = arith.constant 0 : i32
    return %arg0, %c0_i32 : i32, i32
  }
  func.func @transform_2(%arg0: i32) -> (i32, i32) {
    %c0_i32 = arith.constant 0 : i32
    %c0_i32_0 = arith.constant 0 : i32
    %c0_i32_1 = arith.constant 0 : i32
    return %c0_i32, %c0_i32_0 : i32, i32
  }
  func.func @transform_3(%arg0: i32) -> (i32, i32) {
    %c0_i32 = arith.constant 0 : i32
    %c0_i32_0 = arith.constant 0 : i32
    %c0_i32_1 = arith.constant 0 : i32
    return %c0_i32, %c0_i32_0 : i32, i32
  }
  func.func @transform_4(%arg0: i32) -> (i32, i32) {
    %c0_i32 = arith.constant 0 : i32
    %c0_i32_0 = arith.constant 0 : i32
    return %arg0, %c0_i32 : i32, i32
  }
}

</mosaic_0001>

<llo_original>
// kernel: tpu_custom_call.1
$region0: #{tpu_custom_call.1}
  #allocation0 [shape = 'u32[]', space=smem, size = 0x4, offset = 0x4, fixed_abs, tag = 'smem constant byte address 0x4 - core index']
  #allocation1 [shape = 'u32[144,128]{1,0:T(1,128)}', space=vmem, size = 0x12000, scoped, tag = 'internal scratch']
  %s0 = inlined_call_operand.vmem [shape: f32[256,184], index: 0, kind: input, shape index: {}]
  %s1 = inlined_call_operand.vmem [shape: f32[256,32], index: 1, kind: input, shape index: {}]
  %s2 = inlined_call_operand.vmem [shape: bf16[560,192], index: 2, kind: input, shape index: {}]
  %s3 = inlined_call_operand.vmem [shape: f32[8,192], index: 3, kind: input, shape index: {}]
  %s4 = inlined_call_operand.hbm [shape: f32[256,128], index: 4, kind: output, shape index: {}]
  %s5 = sld [smem:[#allocation0]]
  $region49: #{tpu_custom_call.1} parent=0
    _
  %s7 = ssub.s32 1, %s5
  %s8 = scalar_select 0, %s7, %s5
  $region1: #{tpu_custom_call.1} parent=0
    #allocation2 [shape = 'u8[131072]{0}', space=vmem, size = 0x20000, scoped, tag = 'output window, operand 0']
    #allocation3 [shape = 's32[2]{0}', space=sflag, size = 0x8, scoped, tag = 'scoped memory for tpu_custom_call.1']
    %9 = vsyncpa [#allocation3], 0
    %s10 = scalar_lea.sflag [#allocation3], 1
    %11 = vsyncpa %s10, 0
    loop: start=0, step=1, limit=4
    $region2: #{tpu_custom_call.1} parent=1 // loop_pre_header
      _
    $region3: #{tpu_custom_call.1} parent=1 // loop_header
      %s13 = sphi 0, %s17
      %p14 = scmp.ge.s32.totalorder %s13, 4
      %s23 = sphi 0, %s25
      %s26 = sphi 0, %s23
      %s27 = sphi 0, %s26
      %s43 = sphi 0, %s27
      %s49 = sphi 0, %s51
      %s52 = sphi 0, %s49
      %s53 = sphi 0, %s52
      %s69 = sphi 0, %s53
      %s73 = sphi 0, %s73
      %s75 = sphi 0, %s73
      %s76 = sphi 0, %s75
      %s90 = sphi 0, %s76
      %s94 = sphi 0, %s94
      %s96 = sphi 0, %s94
      %s97 = sphi 0, %s96
      %s111 = sphi 0, %s97
      %s117 = sphi 0, %s119
      %s120 = sphi 0, %s117
      %s121 = sphi 0, %s120
      %s137 = sphi 0, %s121
    $region4: #{tpu_custom_call.1} parent=1 // loop_header_branch
      %16 = sbr.rel (%p14) target = $region8
    $region5: #{tpu_custom_call.1} parent=1 // loop_body
      %s18 = ssub.s32 %s13, 1
      %s19 = ssub.s32 %s13, 2
      %s20 = sadd.s32 %s13, 1
      %s21 = ssub.s32 %s13, %s20
      %p22 = scmp.eq.s32.totalorder %s21, 0
      %s24 = sadd.s32 %s23, 1
      %s25 = scalar_select %p22, %s23, %s24
      %p28 = pneg %p22
      %p29 = scmp.eq.s32.totalorder %s13, 1
      %p30 = por %p28, %p29
      %p31 = scmp.ne.s32.totalorder %s23, %s26
      %p32 = scmp.eq.s32.totalorder %s13, 0
      %p33 = por %p31, %p32
      %p34 = scmp.ne.s32.totalorder %s23, %s26
      %p35 = scmp.eq.s32.totalorder %s18, 1
      %p36 = por %p34, %p35
      %p37 = scmp.ne.s32.totalorder %s26, %s27
      %p38 = scmp.eq.s32.totalorder %s18, 0
      %p39 = por %p37, %p38
      %p40 = scmp.ne.s32.totalorder %s26, %s27
      %p41 = scmp.eq.s32.totalorder %s19, 1
      %p42 = por %p40, %p41
      %p44 = scmp.ne.s32.totalorder %s27, %s43
      %p45 = scmp.eq.s32.totalorder %s19, 0
      %p46 = por %p44, %p45
      %s47 = ssub.s32 %s13, %s20
      %p48 = scmp.eq.s32.totalorder %s47, 0
      %s50 = sadd.s32 %s49, 1
      %s51 = scalar_select %p48, %s49, %s50
      %p54 = pneg %p48
      %p55 = scmp.eq.s32.totalorder %s13, 1
      %p56 = por %p54, %p55
      %p57 = scmp.ne.s32.totalorder %s49, %s52
      %p58 = scmp.eq.s32.totalorder %s13, 0
      %p59 = por %p57, %p58
      %p60 = scmp.ne.s32.totalorder %s49, %s52
      %p61 = scmp.eq.s32.totalorder %s18, 1
      %p62 = por %p60, %p61
      %p63 = scmp.ne.s32.totalorder %s52, %s53
      %p64 = scmp.eq.s32.totalorder %s18, 0
      %p65 = por %p63, %p64
      %p66 = scmp.ne.s32.totalorder %s52, %s53
      %p67 = scmp.eq.s32.totalorder %s19, 1
      %p68 = por %p66, %p67
      %p70 = scmp.ne.s32.totalorder %s53, %s69
      %p71 = scmp.eq.s32.totalorder %s19, 0
      %p72 = por %p70, %p71
      %s74 = sadd.s32 %s73, 1
      %p77 = scmp.eq.s32.totalorder %s13, 1
      %p78 = scmp.ne.s32.totalorder %s73, %s75
      %p79 = scmp.eq.s32.totalorder %s13, 0
      %p80 = por %p78, %p79
      %p81 = scmp.ne.s32.totalorder %s73, %s75
      %p82 = scmp.eq.s32.totalorder %s18, 1
      %p83 = por %p81, %p82
      %p84 = scmp.ne.s32.totalorder %s75, %s76
      %p85 = scmp.eq.s32.totalorder %s18, 0
      %p86 = por %p84, %p85
      %p87 = scmp.ne.s32.totalorder %s75, %s76
      %p88 = scmp.eq.s32.totalorder %s19, 1
      %p89 = por %p87, %p88
      %p91 = scmp.ne.s32.totalorder %s76, %s90
      %p92 = scmp.eq.s32.totalorder %s19, 0
      %p93 = por %p91, %p92
      %s95 = sadd.s32 %s94, 1
      %p98 = scmp.eq.s32.totalorder %s13, 1
      %p99 = scmp.ne.s32.totalorder %s94, %s96
      %p100 = scmp.eq.s32.totalorder %s13, 0
      %p101 = por %p99, %p100
      %p102 = scmp.ne.s32.totalorder %s94, %s96
      %p103 = scmp.eq.s32.totalorder %s18, 1
      %p104 = por %p102, %p103
      %p105 = scmp.ne.s32.totalorder %s96, %s97
      %p106 = scmp.eq.s32.totalorder %s18, 0
      %p107 = por %p105, %p106
      %p108 = scmp.ne.s32.totalorder %s96, %s97
      %p109 = scmp.eq.s32.totalorder %s19, 1
      %p110 = por %p108, %p109
      %p112 = scmp.ne.s32.totalorder %s97, %s111
      %p113 = scmp.eq.s32.totalorder %s19, 0
      %p114 = por %p112, %p113
      %s115 = ssub.s32 %s13, %s20
      %p116 = scmp.eq.s32.totalorder %s115, 0
      %s118 = sadd.s32 %s117, 1
      %s119 = scalar_select %p116, %s117, %s118
      %p122 = pneg %p116
      %p123 = scmp.eq.s32.totalorder %s13, 1
      %p124 = por %p122, %p123
      %p125 = scmp.ne.s32.totalorder %s117, %s120
      %p126 = scmp.eq.s32.totalorder %s13, 0
      %p127 = por %p125, %p126
      %p128 = scmp.ne.s32.totalorder %s117, %s120
      %p129 = scmp.eq.s32.totalorder %s18, 1
      %p130 = por %p128, %p129
      %p131 = scmp.ne.s32.totalorder %s120, %s121
      %p132 = scmp.eq.s32.totalorder %s18, 0
      %p133 = por %p131, %p132
      %p134 = scmp.ne.s32.totalorder %s120, %s121
      %p135 = scmp.eq.s32.totalorder %s19, 1
      %p136 = por %p134, %p135
      %p138 = scmp.ne.s32.totalorder %s121, %s137
      %p139 = scmp.eq.s32.totalorder %s19, 0
      %p140 = por %p138, %p139
      %p141 = scmp.le.s32.totalorder 1, %s13
      %p142 = scmp.lt.s32.totalorder %s13, 3
      %p143 = pnand %p141, %p142
      %p144 = pneg %p143
      // Predicated region
      $region9: #{tpu_custom_call.1} parent=5 // pred_check
        _
      $region10: #{tpu_custom_call.1} parent=5 // pred_check_branch
        %146 = sbr.rel (%p143) target = $region12
      $region11: #{tpu_custom_call.1} parent=5 // pred_region
        %s147 = ssub.s32 %s13, 1
        // Predicated region
        $region13: #{tpu_custom_call.1} parent=11 // pred_check
          %p148 = pneg %p86
        $region14: #{tpu_custom_call.1} parent=11 // pred_check_branch
          %150 = sbr.rel (%p148) target = $region16
        $region15: #{tpu_custom_call.1} parent=11 // pred_region
          _
        $region16: #{tpu_custom_call.1} parent=11 // pred_fallthru
          _
        // Predicated region
        $region17: #{tpu_custom_call.1} parent=11 // pred_check
          %p151 = pneg %p107
        $region18: #{tpu_custom_call.1} parent=11 // pred_check_branch
          %153 = sbr.rel (%p151) target = $region20
        $region19: #{tpu_custom_call.1} parent=11 // pred_region
          _
        $region20: #{tpu_custom_call.1} parent=11 // pred_fallthru
          _
      $region12: #{tpu_custom_call.1} parent=5 // pred_fallthru
        _
      %p154 = scmp.lt.s32.totalorder %s13, 2
      // Predicated region
      $region21: #{tpu_custom_call.1} parent=5 // pred_check
        %p155 = pneg %p154
      $region22: #{tpu_custom_call.1} parent=5 // pred_check_branch
        %157 = sbr.rel (%p155) target = $region24
      $region23: #{tpu_custom_call.1} parent=5 // pred_region
        // Predicated region
        $region25: #{tpu_custom_call.1} parent=23 // pred_check
          %p158 = pneg %p33
        $region26: #{tpu_custom_call.1} parent=23 // pred_check_branch
          %160 = sbr.rel (%p158) target = $region28
        $region27: #{tpu_custom_call.1} parent=23 // pred_region
          %s161 = smul.u32 16, %s13
          %p162 = scmp.lt.s32.totalorder %s161, 31
          %s163 = scalar_select %p162, %s161, 31
          %s164 = smul.addr %s163, 2
          %s165 = smul.addr %s164, 8
          %s166 = scalar_lea.vmem %s0, %s165
          %s167 = smul.u32 16, %s13
        $region28: #{tpu_custom_call.1} parent=23 // pred_fallthru
          _
        // Predicated region
        $region29: #{tpu_custom_call.1} parent=23 // pred_check
          %p168 = pneg %p59
        $region30: #{tpu_custom_call.1} parent=23 // pred_check_branch
          %170 = sbr.rel (%p168) target = $region32
        $region31: #{tpu_custom_call.1} parent=23 // pred_region
          %s171 = smul.u32 16, %s13
          %p172 = scmp.lt.s32.totalorder %s171, 31
          %s173 = scalar_select %p172, %s171, 31
          %s174 = smul.addr %s173, 8
          %s175 = scalar_lea.vmem %s1, %s174
          %s176 = smul.u32 16, %s13
        $region32: #{tpu_custom_call.1} parent=23 // pred_fallthru
          _
      $region24: #{tpu_custom_call.1} parent=5 // pred_fallthru
        _
      %p177 = scmp.le.s32.totalorder 1, %s13
      %p178 = scmp.lt.s32.totalorder %s13, 3
      %p179 = pnand %p177, %p178
      %p180 = pneg %p179
      // Predicated region
      $region33: #{tpu_custom_call.1} parent=5 // pred_check
        _
      $region34: #{tpu_custom_call.1} parent=5 // pred_check_branch
        %182 = sbr.rel (%p179) target = $region36
      $region35: #{tpu_custom_call.1} parent=5 // pred_region
        %s183 = ssub.s32 %s13, 1
        %s184 = smul.u32 16, %s18
        %p185 = scmp.lt.s32.totalorder %s184, 31
        %s186 = scalar_select %p185, %s184, 31
        %s187 = smul.addr %s186, 2
        %s188 = smul.addr %s187, 8
        %s189 = scalar_lea.vmem %s0, %s188
        %p190 = pneg %p39
        %p191 = pneg %p36
        %s192 = smul.u32 16, %s18
        %p193 = scmp.lt.s32.totalorder %s192, 31
        %s194 = scalar_select %p193, %s192, 31
        %s195 = smul.addr %s194, 8
        %s196 = scalar_lea.vmem %s1, %s195
        %p197 = pneg %p65
        %p198 = pneg %p62
        %p199 = pneg %p86
        %p200 = pneg %p83
        %p201 = pneg %p107
        %p202 = pneg %p104
        %p203 = pneg %p133
        %p204 = pneg %p130
        %s205 = sand.u32 %s120, 1
        %s206 = scalar_lea.sflag [#allocation3], %s205
        %s207 = sand.u32 %s120, 1
        %s208 = smul.addr %s207, 128
        %s209 = scalar_lea.vmem [#allocation2], %s208
        %s210 = smul.u32 16, %s18
        %p211 = scmp.lt.s32.totalorder %s210, 31
        %s212 = scalar_select %p211, %s210, 31
        %s213 = smul.addr %s212, 2
        %s214 = smul.addr %s213, 8
        %s215 = scalar_lea.vmem %s0, %s214
        %s216 = smul.u32 16, %s18
        %s217 = smul.u32 16, %s18
        %p218 = scmp.lt.s32.totalorder %s217, 31
        %s219 = scalar_select %p218, %s217, 31
        %s220 = smul.addr %s219, 8
        %s221 = scalar_lea.vmem %s1, %s220
        %s222 = smul.u32 16, %s18
        %s223 = smul.u32 16, %s18
        %v225 = vld [vmem:[%s215] sm:$0xff]
        %v226 = vld [vmem:[%s215 + $0x8] sm:$0xff]
        %v227 = vld [vmem:[%s215 + $0x10] sm:$0xff]
        %v228 = vld [vmem:[%s215 + $0x18] sm:$0xff]
        %v229 = vld [vmem:[%s215 + $0x20] sm:$0xff]
        %v230 = vld [vmem:[%s215 + $0x28] sm:$0xff]
        %v231 = vld [vmem:[%s215 + $0x30] sm:$0xff]
        %v232 = vld [vmem:[%s215 + $0x38] sm:$0xff]
        %v233 = vld [vmem:[%s215 + $0x40] sm:$0xff]
        %v234 = vld [vmem:[%s215 + $0x48] sm:$0xff]
        %v235 = vld [vmem:[%s215 + $0x50] sm:$0xff]
        %v236 = vld [vmem:[%s215 + $0x58] sm:$0xff]
        %v237 = vld [vmem:[%s215 + $0x60] sm:$0xff]
        %v238 = vld [vmem:[%s215 + $0x68] sm:$0xff]
        %v239 = vld [vmem:[%s215 + $0x70] sm:$0xff]
        %v240 = vld [vmem:[%s215 + $0x78] sm:$0xff]
        %v241 = vld [vmem:[%s215 + $0x80] sm:$0xff]
        %v242 = vld [vmem:[%s215 + $0x88] sm:$0xff]
        %v243 = vld [vmem:[%s215 + $0x90] sm:$0xff]
        %v244 = vld [vmem:[%s215 + $0x98] sm:$0xff]
        %v245 = vld [vmem:[%s215 + $0xa0] sm:$0xff]
        %v246 = vld [vmem:[%s215 + $0xa8] sm:$0xff]
        %v247 = vld [vmem:[%s215 + $0xb0] sm:$0xff]
        %v248 = vld [vmem:[%s215 + $0xb8] sm:$0xff]
        %v249 = vld [vmem:[%s215 + $0xc0] sm:$0xff]
        %v250 = vld [vmem:[%s215 + $0xc8] sm:$0xff]
        %v251 = vld [vmem:[%s215 + $0xd0] sm:$0xff]
        %v252 = vld [vmem:[%s215 + $0xd8] sm:$0xff]
        %v253 = vld [vmem:[%s215 + $0xe0] sm:$0xff]
        %v254 = vld [vmem:[%s215 + $0xe8] sm:$0xff]
        %v255 = vld [vmem:[%s215 + $0xf0] sm:$0xff]
        %v256 = vld [vmem:[%s215 + $0xf8] sm:$0xff]
        %v257 = vld [vmem:[%s221] sm:$0xff]
        %v258 = vld [vmem:[%s221 + $0x8] sm:$0xff]
        %v259 = vld [vmem:[%s221 + $0x10] sm:$0xff]
        %v260 = vld [vmem:[%s221 + $0x18] sm:$0xff]
        %v261 = vld [vmem:[%s221 + $0x20] sm:$0xff]
        %v262 = vld [vmem:[%s221 + $0x28] sm:$0xff]
        %v263 = vld [vmem:[%s221 + $0x30] sm:$0xff]
        %v264 = vld [vmem:[%s221 + $0x38] sm:$0xff]
        %v265 = vld [vmem:[%s221 + $0x40] sm:$0xff]
        %v266 = vld [vmem:[%s221 + $0x48] sm:$0xff]
        %v267 = vld [vmem:[%s221 + $0x50] sm:$0xff]
        %v268 = vld [vmem:[%s221 + $0x58] sm:$0xff]
        %v269 = vld [vmem:[%s221 + $0x60] sm:$0xff]
        %v270 = vld [vmem:[%s221 + $0x68] sm:$0xff]
        %v271 = vld [vmem:[%s221 + $0x70] sm:$0xff]
        %v272 = vld [vmem:[%s221 + $0x78] sm:$0xff]
        %v273 = vld [vmem:[%s3] sm:$0xff]
        %v274 = vld [vmem:[%s3 + $0x8] sm:$0xff]
        %v275 = vld [vmem:[%s2] sm:$0xff]
        %v276 = vld [vmem:[%s2 + $0x8] sm:$0xff]
        %v277 = vld [vmem:[%s2 + $0x10] sm:$0xff]
        %v278 = vld [vmem:[%s2 + $0x18] sm:$0xff]
        %v279 = vld [vmem:[%s2 + $0x20] sm:$0xff]
        %v280 = vld [vmem:[%s2 + $0x28] sm:$0xff]
        %v281 = vld [vmem:[%s2 + $0x30] sm:$0xff]
        %v282 = vld [vmem:[%s2 + $0x38] sm:$0xff]
        %v283 = vld [vmem:[%s2 + $0x40] sm:$0xff]
        %v284 = vld [vmem:[%s2 + $0x48] sm:$0xff]
        %v285 = vld [vmem:[%s2 + $0x50] sm:$0xff]
        %v286 = vld [vmem:[%s2 + $0x58] sm:$0xff]
        %v287 = vld [vmem:[%s2 + $0x60] sm:$0xff]
        %v288 = vld [vmem:[%s2 + $0x68] sm:$0xff]
        %v289 = vld [vmem:[%s2 + $0x70] sm:$0xff]
        %v290 = vld [vmem:[%s2 + $0x78] sm:$0xff]
        %v291 = vld [vmem:[%s2 + $0x80] sm:$0xff]
        %v292 = vld [vmem:[%s2 + $0x88] sm:$0xff]
        %v293 = vld [vmem:[%s2 + $0x90] sm:$0xff]
        %v294 = vld [vmem:[%s2 + $0x98] sm:$0xff]
        %v295 = vld [vmem:[%s2 + $0xa0] sm:$0xff]
        %v296 = vld [vmem:[%s2 + $0xa8] sm:$0xff]
        %v297 = vld [vmem:[%s2 + $0xb0] sm:$0xff]
        %v298 = vpack.c.bf16 %v227, %v225
        %v299 = vpack.c.bf16 %v228, %v226
        %v300 = vpack.c.bf16 %v231, %v229
        %v301 = vpack.c.bf16 %v232, %v230
        %v302 = vpack.c.bf16 %v235, %v233
        %v303 = vpack.c.bf16 %v236, %v234
        %v304 = vpack.c.bf16 %v239, %v237
        %v305 = vpack.c.bf16 %v240, %v238
        %v306 = vpack.c.bf16 %v243, %v241
        %v307 = vpack.c.bf16 %v244, %v242
        %v308 = vpack.c.bf16 %v247, %v245
        %v309 = vpack.c.bf16 %v248, %v246
        %v310 = vpack.c.bf16 %v251, %v249
        %v311 = vpack.c.bf16 %v252, %v250
        %v312 = vpack.c.bf16 %v255, %v253
        %v313 = vpack.c.bf16 %v256, %v254
        %v314 = vlaneseq
        %v315 = vshrl.u32 %v314, 7
        %v316 = vsub.s32 2, %v315
        %v317 = vrot.slane %v273, %v316
        %v318 = vlaneseq
        %v319 = vshrl.u32 %v318, 7
        %v320 = vsub.s32 2, %v319
        %v321 = vrot.slane %v274, %v320
        %v345 = vunpack.c.l.b16 %v275
        %v346 = vunpack.c.h.b16 %v275
        %v347 = vunpack.c.l.b16 %v276
        %v348 = vunpack.c.h.b16 %v276
        %v349 = vunpack.c.l.b16 %v277
        %v350 = vunpack.c.h.b16 %v277
        %v351 = vunpack.c.l.b16 %v278
        %v352 = vunpack.c.h.b16 %v278
        %v353 = vunpack.c.l.b16 %v279
        %v354 = vunpack.c.h.b16 %v279
        %v355 = vunpack.c.l.b16 %v280
        %v356 = vunpack.c.h.b16 %v280
        %v357 = vunpack.c.l.b16 %v281
        %v358 = vunpack.c.h.b16 %v281
        %v359 = vunpack.c.l.b16 %v282
        %v360 = vunpack.c.h.b16 %v282
        %v361 = vunpack.c.l.b16 %v283
        %v362 = vunpack.c.h.b16 %v283
        %v363 = vunpack.c.l.b16 %v284
        %v364 = vunpack.c.h.b16 %v284
        %v365 = vunpack.c.l.b16 %v285
        %v366 = vunpack.c.h.b16 %v285
        %v367 = vunpack.c.l.b16 %v286
        %v368 = vunpack.c.h.b16 %v286
        %v369 = vunpack.c.l.b16 %v287
        %v370 = vunpack.c.h.b16 %v287
        %v371 = vunpack.c.l.b16 %v288
        %v372 = vunpack.c.h.b16 %v288
        %v373 = vunpack.c.l.b16 %v289
        %v374 = vunpack.c.h.b16 %v289
        %v375 = vunpack.c.l.b16 %v290
        %v376 = vunpack.c.h.b16 %v290
        %v377 = vunpack.c.l.b16 %v291
        %v378 = vunpack.c.h.b16 %v291
        %v379 = vunpack.c.l.b16 %v292
        %v380 = vunpack.c.h.b16 %v292
        %v381 = vunpack.c.l.b16 %v293
        %v382 = vunpack.c.h.b16 %v293
        %v383 = vunpack.c.l.b16 %v294
        %v384 = vunpack.c.h.b16 %v294
        %v385 = vunpack.c.l.b16 %v295
        %v386 = vunpack.c.h.b16 %v295
        %v387 = vunpack.c.l.b16 %v296
        %v388 = vunpack.c.h.b16 %v296
        %v389 = vunpack.c.l.b16 %v297
        %v390 = vunpack.c.h.b16 %v297
        %v391 = vpack.c.b16 %v347, %v345
        %v392 = vpack.c.b16 %v348, %v346
        %v393 = vpack.c.b16 %v351, %v349
        %v394 = vpack.c.b16 %v352, %v350
        %v395 = vpack.c.b16 %v355, %v353
        %v396 = vpack.c.b16 %v356, %v354
        %v397 = vpack.c.b16 %v359, %v357
        %v398 = vpack.c.b16 %v360, %v358
        %v399 = vpack.c.b16 %v363, %v361
        %v400 = vpack.c.b16 %v364, %v362
        %v401 = vpack.c.b16 %v367, %v365
        %v402 = vpack.c.b16 %v368, %v366
        %v403 = vpack.c.b16 %v371, %v369
        %v404 = vpack.c.b16 %v372, %v370
        %v405 = vpack.c.b16 %v375, %v373
        %v406 = vpack.c.b16 %v376, %v374
        %v407 = vpack.c.b16 %v379, %v377
        %v408 = vpack.c.b16 %v380, %v378
        %v409 = vpack.c.b16 %v383, %v381
        %v410 = vpack.c.b16 %v384, %v382
        %v411 = vpack.c.b16 %v387, %v385
        %v412 = vpack.c.b16 %v388, %v386
        %v413 = vpack.c.b16 %v389, %v389
        %v414 = vpack.c.b16 %v390, %v390
        %vm437 = vcmask 457728
        %v439 = vsel %vm437, %v299, 0
        %v442 = vsel %vm437, %v301, 0
        %v445 = vsel %vm437, %v303, 0
        %v448 = vsel %vm437, %v305, 0
        %v451 = vsel %vm437, %v307, 0
        %v454 = vsel %vm437, %v309, 0
        %v457 = vsel %vm437, %v311, 0
        %v460 = vsel %vm437, %v313, 0
        %vm462 = vcmask 1043456
        %v464 = vsel %vm462, %v413, 0
        %v467 = vsel %vm462, %v414, 0
        %469 = vmatprep.subr.bf16.mxu0 %v392
        %470 = vmatpush1.bf16.msra.mxu0 %v391
        %471 = vmatprep.subr.bf16.mxu0 %v394
        %472 = vmatpush1.bf16.msra.mxu0 %v393
        %473 = vmatprep.subr.bf16.mxu0 %v396
        %474 = vmatpush1.bf16.msra.mxu0 %v395
        %475 = vmatprep.subr.bf16.mxu0 %v398
        %476 = vmatpush1.bf16.msra.mxu0 %v397
        %477 = vmatprep.subr.bf16.mxu0 %v400
        %478 = vmatpush1.bf16.msra.mxu0 %v399
        %479 = vmatprep.subr.bf16.mxu0 %v402
        %480 = vmatpush1.bf16.msra.mxu0 %v401
        %481 = vmatprep.subr.bf16.mxu0 %v404
        %482 = vmatpush1.bf16.msra.mxu0 %v403
        %483 = vmatprep.subr.bf16.mxu0 %v406
        %484 = vmatpush1.bf16.msra.mxu0 %v405
        %485 = vmatprep.subr.bf16.mxu0 %v408
        %486 = vmatpush1.bf16.msra.mxu0 %v407
        %487 = vmatprep.subr.bf16.mxu0 %v410
        %488 = vmatpush1.bf16.msra.mxu0 %v409
        %489 = vmatprep.subr.bf16.mxu0 %v412
        %490 = vmatpush1.bf16.msra.mxu0 %v411
        %491 = vmatprep.subr.bf16.mxu0 %v467
        %492 = vmatpush1.bf16.msra.mxu0 %v464
        %493 = vmatprep.subr.bf16.mxu0 0
        %494 = vmatpush1.bf16.msra.mxu0 0
        %495 = vmatprep.subr.bf16.mxu0 0
        %496 = vmatpush1.bf16.msra.mxu0 0
        %497 = vmatprep.subr.bf16.mxu0 0
        %498 = vmatpush1.bf16.msra.mxu0 0
        %499 = vmatprep.subr.bf16.mxu0 0
        %500 = vmatpush1.bf16.msra.mxu0 0
        %501 = vmatprep.mubr.bf16.mxu0 %v439
        %502 = vmatmul.mubr.bf16.gmra.mrb[0].mxu0 %v298
        %v503 = vpop.f32.mrb[0].mxu0
        %v504 = vadd.f32 %v317, %v503
        %v505 = vpop.f32.mrb[0].mxu0
        %v506 = vadd.f32 %v321, %v505
        %v507 = vpop.f32.mrb[0].mxu0
        %v508 = vadd.f32 %v317, %v507
        %v509 = vpop.f32.mrb[0].mxu0
        %v510 = vadd.f32 %v321, %v509
        %511 = vmatprep.mubr.bf16.mxu0 %v442
        %512 = vmatmul.mubr.bf16.gmra.mrb[0].mxu0 %v300
        %v513 = vpop.f32.mrb[0].mxu0
        %v514 = vadd.f32 %v317, %v513
        %v515 = vpop.f32.mrb[0].mxu0
        %v516 = vadd.f32 %v321, %v515
        %v517 = vpop.f32.mrb[0].mxu0
        %v518 = vadd.f32 %v317, %v517
        %v519 = vpop.f32.mrb[0].mxu0
        %v520 = vadd.f32 %v321, %v519
        %521 = vmatprep.mubr.bf16.mxu0 %v445
        %522 = vmatmul.mubr.bf16.gmra.mrb[0].mxu0 %v302
        %v523 = vpop.f32.mrb[0].mxu0
        %v524 = vadd.f32 %v317, %v523
        %v525 = vpop.f32.mrb[0].mxu0
        %v526 = vadd.f32 %v321, %v525
        %v527 = vpop.f32.mrb[0].mxu0
        %v528 = vadd.f32 %v317, %v527
        %v529 = vpop.f32.mrb[0].mxu0
        %v530 = vadd.f32 %v321, %v529
        %531 = vmatprep.mubr.bf16.mxu0 %v448
        %532 = vmatmul.mubr.bf16.gmra.mrb[0].mxu0 %v304
        %v533 = vpop.f32.mrb[0].mxu0
        %v534 = vadd.f32 %v317, %v533
        %v535 = vpop.f32.mrb[0].mxu0
        %v536 = vadd.f32 %v321, %v535
        %v537 = vpop.f32.mrb[0].mxu0
        %v538 = vadd.f32 %v317, %v537
        %v539 = vpop.f32.mrb[0].mxu0
        %v540 = vadd.f32 %v321, %v539
        %541 = vmatprep.mubr.bf16.mxu0 %v451
        %542 = vmatmul.mubr.bf16.gmra.mrb[0].mxu0 %v306
        %v543 = vpop.f32.mrb[0].mxu0
        %v544 = vadd.f32 %v317, %v543
        %v545 = vpop.f32.mrb[0].mxu0
        %v546 = vadd.f32 %v321, %v545
        %v547 = vpop.f32.mrb[0].mxu0
        %v548 = vadd.f32 %v317, %v547
        %v549 = vpop.f32.mrb[0].mxu0
        %v550 = vadd.f32 %v321, %v549
        %551 = vmatprep.mubr.bf16.mxu0 %v454
        %552 = vmatmul.mubr.bf16.gmra.mrb[0].mxu0 %v308
        %v553 = vpop.f32.mrb[0].mxu0
        %v554 = vadd.f32 %v317, %v553
        %v555 = vpop.f32.mrb[0].mxu0
        %v556 = vadd.f32 %v321, %v555
        %v557 = vpop.f32.mrb[0].mxu0
        %v558 = vadd.f32 %v317, %v557
        %v559 = vpop.f32.mrb[0].mxu0
        %v560 = vadd.f32 %v321, %v559
        %561 = vmatprep.mubr.bf16.mxu0 %v457
        %562 = vmatmul.mubr.bf16.gmra.mrb[0].mxu0 %v310
        %v563 = vpop.f32.mrb[0].mxu0
        %v564 = vadd.f32 %v317, %v563
        %v565 = vpop.f32.mrb[0].mxu0
        %v566 = vadd.f32 %v321, %v565
        %v567 = vpop.f32.mrb[0].mxu0
        %v568 = vadd.f32 %v317, %v567
        %v569 = vpop.f32.mrb[0].mxu0
        %v570 = vadd.f32 %v321, %v569
        %571 = vmatprep.mubr.bf16.mxu0 %v460
        %572 = vmatmul.mubr.bf16.gmra.mrb[0].mxu0 %v312
        %v573 = vpop.f32.mrb[0].mxu0
        %v574 = vadd.f32 %v317, %v573
        %v575 = vpop.f32.mrb[0].mxu0
        %v576 = vadd.f32 %v321, %v575
        %v577 = vpop.f32.mrb[0].mxu0
        %v578 = vadd.f32 %v317, %v577
        %v579 = vpop.f32.mrb[0].mxu0
        %v580 = vadd.f32 %v321, %v579
        %581 = vdwg.mxu0
        %598 = vrot.lane.b32.xlu0 %v504, 64
        %v599 = vpop.permute.xlu0 %598
        %600 = vrot.lane.b32.xlu0 %v508, 64
        %v601 = vpop.permute.xlu0 %600
        %602 = vrot.lane.b32.xlu0 %v514, 64
        %v603 = vpop.permute.xlu0 %602
        %604 = vrot.lane.b32.xlu0 %v518, 64
        %v605 = vpop.permute.xlu0 %604
        %606 = vrot.lane.b32.xlu0 %v524, 64
        %v607 = vpop.permute.xlu0 %606
        %608 = vrot.lane.b32.xlu0 %v528, 64
        %v609 = vpop.permute.xlu0 %608
        %610 = vrot.lane.b32.xlu0 %v534, 64
        %v611 = vpop.permute.xlu0 %610
        %612 = vrot.lane.b32.xlu0 %v538, 64
        %v613 = vpop.permute.xlu0 %612
        %614 = vrot.lane.b32.xlu0 %v544, 64
        %v615 = vpop.permute.xlu0 %614
        %616 = vrot.lane.b32.xlu0 %v548, 64
        %v617 = vpop.permute.xlu0 %616
        %618 = vrot.lane.b32.xlu0 %v554, 64
        %v619 = vpop.permute.xlu0 %618
        %620 = vrot.lane.b32.xlu0 %v558, 64
        %v621 = vpop.permute.xlu0 %620
        %622 = vrot.lane.b32.xlu0 %v564, 64
        %v623 = vpop.permute.xlu0 %622
        %624 = vrot.lane.b32.xlu0 %v568, 64
        %v625 = vpop.permute.xlu0 %624
        %626 = vrot.lane.b32.xlu0 %v574, 64
        %v627 = vpop.permute.xlu0 %626
        %628 = vrot.lane.b32.xlu0 %v578, 64
        %v629 = vpop.permute.xlu0 %628
        %v646 = vmul.f32 %v504, %v599
        %v647 = vmul.f32 %v508, %v601
        %v648 = vmul.f32 %v514, %v603
        %v649 = vmul.f32 %v518, %v605
        %v650 = vmul.f32 %v524, %v607
        %v651 = vmul.f32 %v528, %v609
        %v652 = vmul.f32 %v534, %v611
        %v653 = vmul.f32 %v538, %v613
        %v654 = vmul.f32 %v544, %v615
        %v655 = vmul.f32 %v548, %v617
        %v656 = vmul.f32 %v554, %v619
        %v657 = vmul.f32 %v558, %v621
        %v658 = vmul.f32 %v564, %v623
        %v659 = vmul.f32 %v568, %v625
        %v660 = vmul.f32 %v574, %v627
        %v661 = vmul.f32 %v578, %v629
        %v662 = vld [vmem:[%s2 + $0xc0] sm:$0xf]
        %v663 = vld [vmem:[%s2 + $0xc8] sm:$0xf]
        %v664 = vld [vmem:[%s2 + $0xd0] sm:$0xf]
        %v665 = vld [vmem:[%s2 + $0xd8] sm:$0xf]
        %v666 = vld [vmem:[%s2 + $0xe0] sm:$0xf]
        %v667 = vld [vmem:[%s2 + $0xe8] sm:$0xf]
        %v668 = vld [vmem:[%s2 + $0xf0] sm:$0xf]
        %v669 = vld [vmem:[%s2 + $0xf8] sm:$0xf]
        %v670 = vpack.c.bf16 %v647, %v646
        %v671 = vpack.c.bf16 %v649, %v648
        %v672 = vpack.c.bf16 %v651, %v650
        %v673 = vpack.c.bf16 %v653, %v652
        %v674 = vpack.c.bf16 %v655, %v654
        %v675 = vpack.c.bf16 %v657, %v656
        %v676 = vpack.c.bf16 %v659, %v658
        %v677 = vpack.c.bf16 %v661, %v660
        %v686 = vunpack.c.l.b16 %v662
        %v687 = vunpack.c.l.b16 %v663
        %v688 = vunpack.c.l.b16 %v664
        %v689 = vunpack.c.l.b16 %v665
        %v690 = vunpack.c.l.b16 %v666
        %v691 = vunpack.c.l.b16 %v667
        %v692 = vunpack.c.l.b16 %v668
        %v693 = vunpack.c.l.b16 %v669
        %v694 = vpack.c.b16 %v687, %v686
        %v695 = vpack.c.b16 %v689, %v688
        %v696 = vpack.c.b16 %v691, %v690
        %v697 = vpack.c.b16 %v693, %v692
        %vm702 = vcmask 523264
        %v704 = vsel %vm702, %v670, 0
        %v707 = vsel %vm702, %v671, 0
        %v710 = vsel %vm702, %v672, 0
        %v713 = vsel %vm702, %v673, 0
        %v716 = vsel %vm702, %v674, 0
        %v719 = vsel %vm702, %v675, 0
        %v722 = vsel %vm702, %v676, 0
        %v725 = vsel %vm702, %v677, 0
        %727 = vmatprep.subr.bf16.mxu0 0
        %728 = vmatpush1.bf16.msra.mxu0 %v694
        %729 = vmatprep.subr.bf16.mxu0 0
        %730 = vmatpush1.bf16.msra.mxu0 %v695
        %731 = vmatprep.subr.bf16.mxu0 0
        %732 = vmatpush1.bf16.msra.mxu0 %v696
        %733 = vmatprep.subr.bf16.mxu0 0
        %734 = vmatpush1.bf16.msra.mxu0 %v697
        %735 = vmatprep.subr.bf16.mxu0 0
        %736 = vmatpush1.bf16.msra.mxu0 0
        %737 = vmatprep.subr.bf16.mxu0 0
        %738 = vmatpush1.bf16.msra.mxu0 0
        %739 = vmatprep.subr.bf16.mxu0 0
        %740 = vmatpush1.bf16.msra.mxu0 0
        %741 = vmatprep.subr.bf16.mxu0 0
        %742 = vmatpush1.bf16.msra.mxu0 0
        %743 = vmatprep.subr.bf16.mxu0 0
        %744 = vmatpush1.bf16.msra.mxu0 0
        %745 = vmatprep.subr.bf16.mxu0 0
        %746 = vmatpush1.bf16.msra.mxu0 0
        %747 = vmatprep.subr.bf16.mxu0 0
        %748 = vmatpush1.bf16.msra.mxu0 0
        %749 = vmatprep.subr.bf16.mxu0 0
        %750 = vmatpush1.bf16.msra.mxu0 0
        %751 = vmatprep.subr.bf16.mxu0 0
        %752 = vmatpush1.bf16.msra.mxu0 0
        %753 = vmatprep.subr.bf16.mxu0 0
        %754 = vmatpush1.bf16.msra.mxu0 0
        %755 = vmatprep.subr.bf16.mxu0 0
        %756 = vmatpush1.bf16.msra.mxu0 0
        %757 = vmatprep.subr.bf16.mxu0 0
        %758 = vmatpush1.bf16.msra.mxu0 0
        %759 = vmatprep.mubr.bf16.mxu0 0
        %760 = vmatmul.mubr.bf16.gmra.mrb[0].mxu0 %v704
        %v761 = vpop.f32.mrb[0].mxu0
        %v762 = vadd.f32 0.0, %v761
        %v763 = vpop.f32.mrb[0].mxu0
        %v764 = vpop.f32.mrb[0].mxu0
        %v765 = vadd.f32 0.0, %v764
        %v766 = vpop.f32.mrb[0].mxu0
        %767 = vmatprep.mubr.bf16.mxu0 0
        %768 = vmatmul.mubr.bf16.gmra.mrb[0].mxu0 %v707
        %v769 = vpop.f32.mrb[0].mxu0
        %v770 = vadd.f32 0.0, %v769
        %v771 = vpop.f32.mrb[0].mxu0
        %v772 = vpop.f32.mrb[0].mxu0
        %v773 = vadd.f32 0.0, %v772
        %v774 = vpop.f32.mrb[0].mxu0
        %775 = vmatprep.mubr.bf16.mxu0 0
        %776 = vmatmul.mubr.bf16.gmra.mrb[0].mxu0 %v710
        %v777 = vpop.f32.mrb[0].mxu0
        %v778 = vadd.f32 0.0, %v777
        %v779 = vpop.f32.mrb[0].mxu0
        %v780 = vpop.f32.mrb[0].mxu0
        %v781 = vadd.f32 0.0, %v780
        %v782 = vpop.f32.mrb[0].mxu0
        %783 = vmatprep.mubr.bf16.mxu0 0
        %784 = vmatmul.mubr.bf16.gmra.mrb[0].mxu0 %v713
        %v785 = vpop.f32.mrb[0].mxu0
        %v786 = vadd.f32 0.0, %v785
        %v787 = vpop.f32.mrb[0].mxu0
        %v788 = vpop.f32.mrb[0].mxu0
        %v789 = vadd.f32 0.0, %v788
        %v790 = vpop.f32.mrb[0].mxu0
        %791 = vmatprep.mubr.bf16.mxu0 0
        %792 = vmatmul.mubr.bf16.gmra.mrb[0].mxu0 %v716
        %v793 = vpop.f32.mrb[0].mxu0
        %v794 = vadd.f32 0.0, %v793
        %v795 = vpop.f32.mrb[0].mxu0
        %v796 = vpop.f32.mrb[0].mxu0
        %v797 = vadd.f32 0.0, %v796
        %v798 = vpop.f32.mrb[0].mxu0
        %799 = vmatprep.mubr.bf16.mxu0 0
        %800 = vmatmul.mubr.bf16.gmra.mrb[0].mxu0 %v719
        %v801 = vpop.f32.mrb[0].mxu0
        %v802 = vadd.f32 0.0, %v801
        %v803 = vpop.f32.mrb[0].mxu0
        %v804 = vpop.f32.mrb[0].mxu0
        %v805 = vadd.f32 0.0, %v804
        %v806 = vpop.f32.mrb[0].mxu0
        %807 = vmatprep.mubr.bf16.mxu0 0
        %808 = vmatmul.mubr.bf16.gmra.mrb[0].mxu0 %v722
        %v809 = vpop.f32.mrb[0].mxu0
        %v810 = vadd.f32 0.0, %v809
        %v811 = vpop.f32.mrb[0].mxu0
        %v812 = vpop.f32.mrb[0].mxu0
        %v813 = vadd.f32 0.0, %v812
        %v814 = vpop.f32.mrb[0].mxu0
        %815 = vmatprep.mubr.bf16.mxu0 0
        %816 = vmatmul.mubr.bf16.gmra.mrb[0].mxu0 %v725
        %v817 = vpop.f32.mrb[0].mxu0
        %v818 = vadd.f32 0.0, %v817
        %v819 = vpop.f32.mrb[0].mxu0
        %v820 = vpop.f32.mrb[0].mxu0
        %v821 = vadd.f32 0.0, %v820
        %v822 = vpop.f32.mrb[0].mxu0
        %823 = vdwg.mxu0
        %vm824 = vcmask 31744
        %v825 = vsel %vm824, %v762, -inf
        %v826 = vrot.slane %v825, 4
        %v827 = vmax.f32 %v825, %v826
        %v828 = vrot.slane %v827, 2
        %v829 = vmax.f32 %v827, %v828
        %v830 = vrot.slane %v829, 1
        %v831 = vmax.f32 %v829, %v830
        %v832 = vsel %vm824, %v765, -inf
        %v833 = vrot.slane %v832, 4
        %v834 = vmax.f32 %v832, %v833
        %v835 = vrot.slane %v834, 2
        %v836 = vmax.f32 %v834, %v835
        %v837 = vrot.slane %v836, 1
        %v838 = vmax.f32 %v836, %v837
        %v839 = vsel %vm824, %v770, -inf
        %v840 = vrot.slane %v839, 4
        %v841 = vmax.f32 %v839, %v840
        %v842 = vrot.slane %v841, 2
        %v843 = vmax.f32 %v841, %v842
        %v844 = vrot.slane %v843, 1
        %v845 = vmax.f32 %v843, %v844
        %v846 = vsel %vm824, %v773, -inf
        %v847 = vrot.slane %v846, 4
        %v848 = vmax.f32 %v846, %v847
        %v849 = vrot.slane %v848, 2
        %v850 = vmax.f32 %v848, %v849
        %v851 = vrot.slane %v850, 1
        %v852 = vmax.f32 %v850, %v851
        %v853 = vsel %vm824, %v778, -inf
        %v854 = vrot.slane %v853, 4
        %v855 = vmax.f32 %v853, %v854
        %v856 = vrot.slane %v855, 2
        %v857 = vmax.f32 %v855, %v856
        %v858 = vrot.slane %v857, 1
        %v859 = vmax.f32 %v857, %v858
        %v860 = vsel %vm824, %v781, -inf
        %v861 = vrot.slane %v860, 4
        %v862 = vmax.f32 %v860, %v861
        %v863 = vrot.slane %v862, 2
        %v864 = vmax.f32 %v862, %v863
        %v865 = vrot.slane %v864, 1
        %v866 = vmax.f32 %v864, %v865
        %v867 = vsel %vm824, %v786, -inf
        %v868 = vrot.slane %v867, 4
        %v869 = vmax.f32 %v867, %v868
        %v870 = vrot.slane %v869, 2
        %v871 = vmax.f32 %v869, %v870
        %v872 = vrot.slane %v871, 1
        %v873 = vmax.f32 %v871, %v872
        %v874 = vsel %vm824, %v789, -inf
        %v875 = vrot.slane %v874, 4
        %v876 = vmax.f32 %v874, %v875
        %v877 = vrot.slane %v876, 2
        %v878 = vmax.f32 %v876, %v877
        %v879 = vrot.slane %v878, 1
        %v880 = vmax.f32 %v878, %v879
        %v881 = vsel %vm824, %v794, -inf
        %v882 = vrot.slane %v881, 4
        %v883 = vmax.f32 %v881, %v882
        %v884 = vrot.slane %v883, 2
        %v885 = vmax.f32 %v883, %v884
        %v886 = vrot.slane %v885, 1
        %v887 = vmax.f32 %v885, %v886
        %v888 = vsel %vm824, %v797, -inf
        %v889 = vrot.slane %v888, 4
        %v890 = vmax.f32 %v888, %v889
        %v891 = vrot.slane %v890, 2
        %v892 = vmax.f32 %v890, %v891
        %v893 = vrot.slane %v892, 1
        %v894 = vmax.f32 %v892, %v893
        %v895 = vsel %vm824, %v802, -inf
        %v896 = vrot.slane %v895, 4
        %v897 = vmax.f32 %v895, %v896
        %v898 = vrot.slane %v897, 2
        %v899 = vmax.f32 %v897, %v898
        %v900 = vrot.slane %v899, 1
        %v901 = vmax.f32 %v899, %v900
        %v902 = vsel %vm824, %v805, -inf
        %v903 = vrot.slane %v902, 4
        %v904 = vmax.f32 %v902, %v903
        %v905 = vrot.slane %v904, 2
        %v906 = vmax.f32 %v904, %v905
        %v907 = vrot.slane %v906, 1
        %v908 = vmax.f32 %v906, %v907
        %v909 = vsel %vm824, %v810, -inf
        %v910 = vrot.slane %v909, 4
        %v911 = vmax.f32 %v909, %v910
        %v912 = vrot.slane %v911, 2
        %v913 = vmax.f32 %v911, %v912
        %v914 = vrot.slane %v913, 1
        %v915 = vmax.f32 %v913, %v914
        %v916 = vsel %vm824, %v813, -inf
        %v917 = vrot.slane %v916, 4
        %v918 = vmax.f32 %v916, %v917
        %v919 = vrot.slane %v918, 2
        %v920 = vmax.f32 %v918, %v919
        %v921 = vrot.slane %v920, 1
        %v922 = vmax.f32 %v920, %v921
        %v923 = vsel %vm824, %v818, -inf
        %v924 = vrot.slane %v923, 4
        %v925 = vmax.f32 %v923, %v924
        %v926 = vrot.slane %v925, 2
        %v927 = vmax.f32 %v925, %v926
        %v928 = vrot.slane %v927, 1
        %v929 = vmax.f32 %v927, %v928
        %v930 = vsel %vm824, %v821, -inf
        %v931 = vrot.slane %v930, 4
        %v932 = vmax.f32 %v930, %v931
        %v933 = vrot.slane %v932, 2
        %v934 = vmax.f32 %v932, %v933
        %v935 = vrot.slane %v934, 1
        %v936 = vmax.f32 %v934, %v935
        %v937 = vsub.f32 %v762, %v831
        %v938 = vsub.f32 %v765, %v838
        %v939 = vsub.f32 %v770, %v845
        %v940 = vsub.f32 %v773, %v852
        %v941 = vsub.f32 %v778, %v859
        %v942 = vsub.f32 %v781, %v866
        %v943 = vsub.f32 %v786, %v873
        %v944 = vsub.f32 %v789, %v880
        %v945 = vsub.f32 %v794, %v887
        %v946 = vsub.f32 %v797, %v894
        %v947 = vsub.f32 %v802, %v901
        %v948 = vsub.f32 %v805, %v908
        %v949 = vsub.f32 %v810, %v915
        %v950 = vsub.f32 %v813, %v922
        %v951 = vsub.f32 %v818, %v929
        %v952 = vsub.f32 %v821, %v936
        %v953 = vmul.f32 %v937, 1.442695
        %v954 = vpow.pop %v953
        %v955 = vmul.f32 %v938, 1.442695
        %v956 = vpow.pop %v955
        %v957 = vmul.f32 %v939, 1.442695
        %v958 = vpow.pop %v957
        %v959 = vmul.f32 %v940, 1.442695
        %v960 = vpow.pop %v959
        %v961 = vmul.f32 %v941, 1.442695
        %v962 = vpow.pop %v961
        %v963 = vmul.f32 %v942, 1.442695
        %v964 = vpow.pop %v963
        %v965 = vmul.f32 %v943, 1.442695
        %v966 = vpow.pop %v965
        %v967 = vmul.f32 %v944, 1.442695
        %v968 = vpow.pop %v967
        %v969 = vmul.f32 %v945, 1.442695
        %v970 = vpow.pop %v969
        %v971 = vmul.f32 %v946, 1.442695
        %v972 = vpow.pop %v971
        %v973 = vmul.f32 %v947, 1.442695
        %v974 = vpow.pop %v973
        %v975 = vmul.f32 %v948, 1.442695
        %v976 = vpow.pop %v975
        %v977 = vmul.f32 %v949, 1.442695
        %v978 = vpow.pop %v977
        %v979 = vmul.f32 %v950, 1.442695
        %v980 = vpow.pop %v979
        %v981 = vmul.f32 %v951, 1.442695
        %v982 = vpow.pop %v981
        %v983 = vmul.f32 %v952, 1.442695
        %v984 = vpow.pop %v983
        %v985 = vsel %vm824, %v954, 0.0
        %v986 = vrot.slane %v985, 4
        %v987 = vadd.f32 %v985, %v986
        %v988 = vrot.slane %v987, 2
        %v989 = vadd.f32 %v987, %v988
        %v990 = vrot.slane %v989, 1
        %v991 = vadd.f32 %v989, %v990
        %v992 = vsel %vm824, %v956, 0.0
        %v993 = vrot.slane %v992, 4
        %v994 = vadd.f32 %v992, %v993
        %v995 = vrot.slane %v994, 2
        %v996 = vadd.f32 %v994, %v995
        %v997 = vrot.slane %v996, 1
        %v998 = vadd.f32 %v996, %v997
        %v999 = vsel %vm824, %v958, 0.0
        %v1000 = vrot.slane %v999, 4
        %v1001 = vadd.f32 %v999, %v1000
        %v1002 = vrot.slane %v1001, 2
        %v1003 = vadd.f32 %v1001, %v1002
        %v1004 = vrot.slane %v1003, 1
        %v1005 = vadd.f32 %v1003, %v1004
        %v1006 = vsel %vm824, %v960, 0.0
        %v1007 = vrot.slane %v1006, 4
        %v1008 = vadd.f32 %v1006, %v1007
        %v1009 = vrot.slane %v1008, 2
        %v1010 = vadd.f32 %v1008, %v1009
        %v1011 = vrot.slane %v1010, 1
        %v1012 = vadd.f32 %v1010, %v1011
        %v1013 = vsel %vm824, %v962, 0.0
        %v1014 = vrot.slane %v1013, 4
        %v1015 = vadd.f32 %v1013, %v1014
        %v1016 = vrot.slane %v1015, 2
        %v1017 = vadd.f32 %v1015, %v1016
        %v1018 = vrot.slane %v1017, 1
        %v1019 = vadd.f32 %v1017, %v1018
        %v1020 = vsel %vm824, %v964, 0.0
        %v1021 = vrot.slane %v1020, 4
        %v1022 = vadd.f32 %v1020, %v1021
        %v1023 = vrot.slane %v1022, 2
        %v1024 = vadd.f32 %v1022, %v1023
        %v1025 = vrot.slane %v1024, 1
        %v1026 = vadd.f32 %v1024, %v1025
        %v1027 = vsel %vm824, %v966, 0.0
        %v1028 = vrot.slane %v1027, 4
        %v1029 = vadd.f32 %v1027, %v1028
        %v1030 = vrot.slane %v1029, 2
        %v1031 = vadd.f32 %v1029, %v1030
        %v1032 = vrot.slane %v1031, 1
        %v1033 = vadd.f32 %v1031, %v1032
        %v1034 = vsel %vm824, %v968, 0.0
        %v1035 = vrot.slane %v1034, 4
        %v1036 = vadd.f32 %v1034, %v1035
        %v1037 = vrot.slane %v1036, 2
        %v1038 = vadd.f32 %v1036, %v1037
        %v1039 = vrot.slane %v1038, 1
        %v1040 = vadd.f32 %v1038, %v1039
        %v1041 = vsel %vm824, %v970, 0.0
        %v1042 = vrot.slane %v1041, 4
        %v1043 = vadd.f32 %v1041, %v1042
        %v1044 = vrot.slane %v1043, 2
        %v1045 = vadd.f32 %v1043, %v1044
        %v1046 = vrot.slane %v1045, 1
        %v1047 = vadd.f32 %v1045, %v1046
        %v1048 = vsel %vm824, %v972, 0.0
        %v1049 = vrot.slane %v1048, 4
        %v1050 = vadd.f32 %v1048, %v1049
        %v1051 = vrot.slane %v1050, 2
        %v1052 = vadd.f32 %v1050, %v1051
        %v1053 = vrot.slane %v1052, 1
        %v1054 = vadd.f32 %v1052, %v1053
        %v1055 = vsel %vm824, %v974, 0.0
        %v1056 = vrot.slane %v1055, 4
        %v1057 = vadd.f32 %v1055, %v1056
        %v1058 = vrot.slane %v1057, 2
        %v1059 = vadd.f32 %v1057, %v1058
        %v1060 = vrot.slane %v1059, 1
        %v1061 = vadd.f32 %v1059, %v1060
        %v1062 = vsel %vm824, %v976, 0.0
        %v1063 = vrot.slane %v1062, 4
        %v1064 = vadd.f32 %v1062, %v1063
        %v1065 = vrot.slane %v1064, 2
        %v1066 = vadd.f32 %v1064, %v1065
        %v1067 = vrot.slane %v1066, 1
        %v1068 = vadd.f32 %v1066, %v1067
        %v1069 = vsel %vm824, %v978, 0.0
        %v1070 = vrot.slane %v1069, 4
        %v1071 = vadd.f32 %v1069, %v1070
        %v1072 = vrot.slane %v1071, 2
        %v1073 = vadd.f32 %v1071, %v1072
        %v1074 = vrot.slane %v1073, 1
        %v1075 = vadd.f32 %v1073, %v1074
        %v1076 = vsel %vm824, %v980, 0.0
        %v1077 = vrot.slane %v1076, 4
        %v1078 = vadd.f32 %v1076, %v1077
        %v1079 = vrot.slane %v1078, 2
        %v1080 = vadd.f32 %v1078, %v1079
        %v1081 = vrot.slane %v1080, 1
        %v1082 = vadd.f32 %v1080, %v1081
        %v1083 = vsel %vm824, %v982, 0.0
        %v1084 = vrot.slane %v1083, 4
        %v1085 = vadd.f32 %v1083, %v1084
        %v1086 = vrot.slane %v1085, 2
        %v1087 = vadd.f32 %v1085, %v1086
        %v1088 = vrot.slane %v1087, 1
        %v1089 = vadd.f32 %v1087, %v1088
        %v1090 = vsel %vm824, %v984, 0.0
        %v1091 = vrot.slane %v1090, 4
        %v1092 = vadd.f32 %v1090, %v1091
        %v1093 = vrot.slane %v1092, 2
        %v1094 = vadd.f32 %v1092, %v1093
        %v1095 = vrot.slane %v1094, 1
        %v1096 = vadd.f32 %v1094, %v1095
        %v1097 = vrcp.pop %v991
        %v1098 = vrcp.pop %v998
        %v1099 = vrcp.pop %v1005
        %v1100 = vrcp.pop %v1012
        %v1101 = vrcp.pop %v1019
        %v1102 = vrcp.pop %v1026
        %v1103 = vrcp.pop %v1033
        %v1104 = vrcp.pop %v1040
        %v1105 = vrcp.pop %v1047
        %v1106 = vrcp.pop %v1054
        %v1107 = vrcp.pop %v1061
        %v1108 = vrcp.pop %v1068
        %v1109 = vrcp.pop %v1075
        %v1110 = vrcp.pop %v1082
        %v1111 = vrcp.pop %v1089
        %v1112 = vrcp.pop %v1096
        %v1113 = vmul.f32 %v954, %v1097
        %v1114 = vmul.f32 %v956, %v1098
        %v1115 = vmul.f32 %v958, %v1099
        %v1116 = vmul.f32 %v960, %v1100
        %v1117 = vmul.f32 %v962, %v1101
        %v1118 = vmul.f32 %v964, %v1102
        %v1119 = vmul.f32 %v966, %v1103
        %v1120 = vmul.f32 %v968, %v1104
        %v1121 = vmul.f32 %v970, %v1105
        %v1122 = vmul.f32 %v972, %v1106
        %v1123 = vmul.f32 %v974, %v1107
        %v1124 = vmul.f32 %v976, %v1108
        %v1125 = vmul.f32 %v978, %v1109
        %v1126 = vmul.f32 %v980, %v1110
        %v1127 = vmul.f32 %v982, %v1111
        %v1128 = vmul.f32 %v984, %v1112
        %v1129 = vlaneseq
        %v1130 = vshrl.u32 %v1129, 7
        %v1131 = vsub.s32 0, %v1130
        %v1132 = vrot.slane %v273, %v1131
        %v1133 = vmul.f32 %v225, %v1132
        %v1134 = vmul.f32 %v227, %v1132
        %v1135 = vmul.f32 %v229, %v1132
        %v1136 = vmul.f32 %v231, %v1132
        %v1137 = vmul.f32 %v233, %v1132
        %v1138 = vmul.f32 %v235, %v1132
        %v1139 = vmul.f32 %v237, %v1132
        %v1140 = vmul.f32 %v239, %v1132
        %v1141 = vmul.f32 %v241, %v1132
        %v1142 = vmul.f32 %v243, %v1132
        %v1143 = vmul.f32 %v245, %v1132
        %v1144 = vmul.f32 %v247, %v1132
        %v1145 = vmul.f32 %v249, %v1132
        %v1146 = vmul.f32 %v251, %v1132
        %v1147 = vmul.f32 %v253, %v1132
        %v1148 = vmul.f32 %v255, %v1132
        %v1149 = vlaneseq
        %v1150 = vshrl.u32 %v1149, 7
        %v1151 = vsub.s32 1, %v1150
        %v1152 = vrot.slane %v273, %v1151
        %v1153 = vadd.f32 %v1133, %v1152
        %v1154 = vadd.f32 %v1134, %v1152
        %v1155 = vadd.f32 %v1135, %v1152
        %v1156 = vadd.f32 %v1136, %v1152
        %v1157 = vadd.f32 %v1137, %v1152
        %v1158 = vadd.f32 %v1138, %v1152
        %v1159 = vadd.f32 %v1139, %v1152
        %v1160 = vadd.f32 %v1140, %v1152
        %v1161 = vadd.f32 %v1141, %v1152
        %v1162 = vadd.f32 %v1142, %v1152
        %v1163 = vadd.f32 %v1143, %v1152
        %v1164 = vadd.f32 %v1144, %v1152
        %v1165 = vadd.f32 %v1145, %v1152
        %v1166 = vadd.f32 %v1146, %v1152
        %v1167 = vadd.f32 %v1147, %v1152
        %v1168 = vadd.f32 %v1148, %v1152
        %v1169 = vld [vmem:[%s2 + $0x100] sm:$0x3]
        %v1170 = vpack.c.bf16 %v1114, %v1113
        %v1171 = vpack.c.bf16 %v1116, %v1115
        %v1172 = vpack.c.bf16 %v1118, %v1117
        %v1173 = vpack.c.bf16 %v1120, %v1119
        %v1174 = vpack.c.bf16 %v1122, %v1121
        %v1175 = vpack.c.bf16 %v1124, %v1123
        %v1176 = vpack.c.bf16 %v1126, %v1125
        %v1177 = vpack.c.bf16 %v1128, %v1127
        %v1179 = vsel %vm824, %v1170, 0
        %v1182 = vsel %vm824, %v1171, 0
        %v1185 = vsel %vm824, %v1172, 0
        %v1188 = vsel %vm824, %v1173, 0
        %v1191 = vsel %vm824, %v1174, 0
        %v1194 = vsel %vm824, %v1175, 0
        %v1197 = vsel %vm824, %v1176, 0
        %v1200 = vsel %vm824, %v1177, 0
        %vm1202 = vcmask 1041408
        %v1204 = vsel %vm1202, %v1169, 0
        %1206 = vmatprep.subr.bf16.mxu0 0
        %1207 = vmatpush1.bf16.msra.mxu0 %v1204
        %1208 = vmatprep.subr.bf16.mxu0 0
        %1209 = vmatpush1.bf16.msra.mxu0 0
        %1210 = vmatprep.subr.bf16.mxu0 0
        %1211 = vmatpush1.bf16.msra.mxu0 0
        %1212 = vmatprep.subr.bf16.mxu0 0
        %1213 = vmatpush1.bf16.msra.mxu0 0
        %1214 = vmatprep.subr.bf16.mxu0 0
        %1215 = vmatpush1.bf16.msra.mxu0 0
        %1216 = vmatprep.subr.bf16.mxu0 0
        %1217 = vmatpush1.bf16.msra.mxu0 0
        %1218 = vmatprep.subr.bf16.mxu0 0
        %1219 = vmatpush1.bf16.msra.mxu0 0
        %1220 = vmatprep.subr.bf16.mxu0 0
        %1221 = vmatpush1.bf16.msra.mxu0 0
        %1222 = vmatprep.subr.bf16.mxu0 0
        %1223 = vmatpush1.bf16.msra.mxu0 0
        %1224 = vmatprep.subr.bf16.mxu0 0
        %1225 = vmatpush1.bf16.msra.mxu0 0
        %1226 = vmatprep.subr.bf16.mxu0 0
        %1227 = vmatpush1.bf16.msra.mxu0 0
        %1228 = vmatprep.subr.bf16.mxu0 0
        %1229 = vmatpush1.bf16.msra.mxu0 0
        %1230 = vmatprep.subr.bf16.mxu0 0
        %1231 = vmatpush1.bf16.msra.mxu0 0
        %1232 = vmatprep.subr.bf16.mxu0 0
        %1233 = vmatpush1.bf16.msra.mxu0 0
        %1234 = vmatprep.subr.bf16.mxu0 0
        %1235 = vmatpush1.bf16.msra.mxu0 0
        %1236 = vmatprep.subr.bf16.mxu0 0
        %1237 = vmatpush1.bf16.msra.mxu0 0
        %1238 = vmatprep.mubr.bf16.mxu0 0
        %1239 = vmatmul.mubr.bf16.gmra.mrb[0].mxu0 %v1179
        %v1240 = vpop.f32.mrb[0].mxu0
        %v1241 = vadd.f32 0.0, %v1240
        %v1242 = vpop.f32.mrb[0].mxu0
        %v1243 = vpop.f32.mrb[0].mxu0
        %v1244 = vadd.f32 0.0, %v1243
        %v1245 = vpop.f32.mrb[0].mxu0
        %1246 = vmatprep.mubr.bf16.mxu0 0
        %1247 = vmatmul.mubr.bf16.gmra.mrb[0].mxu0 %v1182
        %v1248 = vpop.f32.mrb[0].mxu0
        %v1249 = vadd.f32 0.0, %v1248
        %v1250 = vpop.f32.mrb[0].mxu0
        %v1251 = vpop.f32.mrb[0].mxu0
        %v1252 = vadd.f32 0.0, %v1251
        %v1253 = vpop.f32.mrb[0].mxu0
        %1254 = vmatprep.mubr.bf16.mxu0 0
        %1255 = vmatmul.mubr.bf16.gmra.mrb[0].mxu0 %v1185
        %v1256 = vpop.f32.mrb[0].mxu0
        %v1257 = vadd.f32 0.0, %v1256
        %v1258 = vpop.f32.mrb[0].mxu0
        %v1259 = vpop.f32.mrb[0].mxu0
        %v1260 = vadd.f32 0.0, %v1259
        %v1261 = vpop.f32.mrb[0].mxu0
        %1262 = vmatprep.mubr.bf16.mxu0 0
        %1263 = vmatmul.mubr.bf16.gmra.mrb[0].mxu0 %v1188
        %v1264 = vpop.f32.mrb[0].mxu0
        %v1265 = vadd.f32 0.0, %v1264
        %v1266 = vpop.f32.mrb[0].mxu0
        %v1267 = vpop.f32.mrb[0].mxu0
        %v1268 = vadd.f32 0.0, %v1267
        %v1269 = vpop.f32.mrb[0].mxu0
        %1270 = vmatprep.mubr.bf16.mxu0 0
        %1271 = vmatmul.mubr.bf16.gmra.mrb[0].mxu0 %v1191
        %v1272 = vpop.f32.mrb[0].mxu0
        %v1273 = vadd.f32 0.0, %v1272
        %v1274 = vpop.f32.mrb[0].mxu0
        %v1275 = vpop.f32.mrb[0].mxu0
        %v1276 = vadd.f32 0.0, %v1275
        %v1277 = vpop.f32.mrb[0].mxu0
        %1278 = vmatprep.mubr.bf16.mxu0 0
        %1279 = vmatmul.mubr.bf16.gmra.mrb[0].mxu0 %v1194
        %v1280 = vpop.f32.mrb[0].mxu0
        %v1281 = vadd.f32 0.0, %v1280
        %v1282 = vpop.f32.mrb[0].mxu0
        %v1283 = vpop.f32.mrb[0].mxu0
        %v1284 = vadd.f32 0.0, %v1283
        %v1285 = vpop.f32.mrb[0].mxu0
        %1286 = vmatprep.mubr.bf16.mxu0 0
        %1287 = vmatmul.mubr.bf16.gmra.mrb[0].mxu0 %v1197
        %v1288 = vpop.f32.mrb[0].mxu0
        %v1289 = vadd.f32 0.0, %v1288
        %v1290 = vpop.f32.mrb[0].mxu0
        %v1291 = vpop.f32.mrb[0].mxu0
        %v1292 = vadd.f32 0.0, %v1291
        %v1293 = vpop.f32.mrb[0].mxu0
        %1294 = vmatprep.mubr.bf16.mxu0 0
        %1295 = vmatmul.mubr.bf16.gmra.mrb[0].mxu0 %v1200
        %v1296 = vpop.f32.mrb[0].mxu0
        %v1297 = vadd.f32 0.0, %v1296
        %v1298 = vpop.f32.mrb[0].mxu0
        %v1299 = vpop.f32.mrb[0].mxu0
        %v1300 = vadd.f32 0.0, %v1299
        %v1301 = vpop.f32.mrb[0].mxu0
        %1302 = vdwg.mxu0
        %v1303 = vmul.f32 %v1241, %v1153
        %v1304 = vmul.f32 %v1244, %v1154
        %v1305 = vmul.f32 %v1249, %v1155
        %v1306 = vmul.f32 %v1252, %v1156
        %v1307 = vmul.f32 %v1257, %v1157
        %v1308 = vmul.f32 %v1260, %v1158
        %v1309 = vmul.f32 %v1265, %v1159
        %v1310 = vmul.f32 %v1268, %v1160
        %v1311 = vmul.f32 %v1273, %v1161
        %v1312 = vmul.f32 %v1276, %v1162
        %v1313 = vmul.f32 %v1281, %v1163
        %v1314 = vmul.f32 %v1284, %v1164
        %v1315 = vmul.f32 %v1289, %v1165
        %v1316 = vmul.f32 %v1292, %v1166
        %v1317 = vmul.f32 %v1297, %v1167
        %v1318 = vmul.f32 %v1300, %v1168
        %v1319 = vld [vmem:[%s2 + $0x110] sm:$0xf]
        %v1320 = vld [vmem:[%s2 + $0x118] sm:$0xf]
        %v1321 = vld [vmem:[%s2 + $0x120] sm:$0xf]
        %v1322 = vld [vmem:[%s2 + $0x128] sm:$0xf]
        %v1323 = vld [vmem:[%s2 + $0x130] sm:$0xf]
        %v1324 = vld [vmem:[%s2 + $0x138] sm:$0xf]
        %v1325 = vld [vmem:[%s2 + $0x140] sm:$0xf]
        %v1326 = vld [vmem:[%s2 + $0x148] sm:$0xf]
        %v1327 = vld [vmem:[%s2 + $0x150] sm:$0xf]
        %v1328 = vld [vmem:[%s2 + $0x158] sm:$0xf]
        %v1329 = vld [vmem:[%s2 + $0x160] sm:$0xf]
        %v1330 = vld [vmem:[%s2 + $0x168] sm:$0xf]
        %v1331 = vld [vmem:[%s2 + $0x170] sm:$0xf]
        %v1332 = vld [vmem:[%s2 + $0x178] sm:$0xf]
        %v1333 = vld [vmem:[%s2 + $0x180] sm:$0xf]
        %v1334 = vld [vmem:[%s2 + $0x188] sm:$0xf]
        %v1335 = vpack.c.bf16 %v1304, %v1303
        %v1336 = vpack.c.bf16 %v1306, %v1305
        %v1337 = vpack.c.bf16 %v1308, %v1307
        %v1338 = vpack.c.bf16 %v1310, %v1309
        %v1339 = vpack.c.bf16 %v1312, %v1311
        %v1340 = vpack.c.bf16 %v1314, %v1313
        %v1341 = vpack.c.bf16 %v1316, %v1315
        %v1342 = vpack.c.bf16 %v1318, %v1317
        %v1359 = vunpack.c.l.b16 %v1319
        %v1360 = vunpack.c.l.b16 %v1320
        %v1361 = vunpack.c.l.b16 %v1321
        %v1362 = vunpack.c.l.b16 %v1322
        %v1363 = vunpack.c.l.b16 %v1323
        %v1364 = vunpack.c.l.b16 %v1324
        %v1365 = vunpack.c.l.b16 %v1325
        %v1366 = vunpack.c.l.b16 %v1326
        %v1367 = vunpack.c.l.b16 %v1327
        %v1368 = vunpack.c.l.b16 %v1328
        %v1369 = vunpack.c.l.b16 %v1329
        %v1370 = vunpack.c.l.b16 %v1330
        %v1371 = vunpack.c.l.b16 %v1331
        %v1372 = vunpack.c.l.b16 %v1332
        %v1373 = vunpack.c.l.b16 %v1333
        %v1374 = vunpack.c.l.b16 %v1334
        %v1375 = vpack.c.b16 %v1360, %v1359
        %v1376 = vpack.c.b16 %v1362, %v1361
        %v1377 = vpack.c.b16 %v1364, %v1363
        %v1378 = vpack.c.b16 %v1366, %v1365
        %v1379 = vpack.c.b16 %v1368, %v1367
        %v1380 = vpack.c.b16 %v1370, %v1369
        %v1381 = vpack.c.b16 %v1372, %v1371
        %v1382 = vpack.c.b16 %v1374, %v1373
        %1391 = vmatprep.subr.bf16.mxu0 0
        %1392 = vmatpush1.bf16.msra.mxu0 %v1375
        %1393 = vmatprep.subr.bf16.mxu0 0
        %1394 = vmatpush1.bf16.msra.mxu0 %v1376
        %1395 = vmatprep.subr.bf16.mxu0 0
        %1396 = vmatpush1.bf16.msra.mxu0 %v1377
        %1397 = vmatprep.subr.bf16.mxu0 0
        %1398 = vmatpush1.bf16.msra.mxu0 %v1378
        %1399 = vmatprep.subr.bf16.mxu0 0
        %1400 = vmatpush1.bf16.msra.mxu0 %v1379
        %1401 = vmatprep.subr.bf16.mxu0 0
        %1402 = vmatpush1.bf16.msra.mxu0 %v1380
        %1403 = vmatprep.subr.bf16.mxu0 0
        %1404 = vmatpush1.bf16.msra.mxu0 %v1381
        %1405 = vmatprep.subr.bf16.mxu0 0
        %1406 = vmatpush1.bf16.msra.mxu0 %v1382
        %1407 = vmatprep.subr.bf16.mxu0 0
        %1408 = vmatpush1.bf16.msra.mxu0 0
        %1409 = vmatprep.subr.bf16.mxu0 0
        %1410 = vmatpush1.bf16.msra.mxu0 0
        %1411 = vmatprep.subr.bf16.mxu0 0
        %1412 = vmatpush1.bf16.msra.mxu0 0
        %1413 = vmatprep.subr.bf16.mxu0 0
        %1414 = vmatpush1.bf16.msra.mxu0 0
        %1415 = vmatprep.subr.bf16.mxu0 0
        %1416 = vmatpush1.bf16.msra.mxu0 0
        %1417 = vmatprep.subr.bf16.mxu0 0
        %1418 = vmatpush1.bf16.msra.mxu0 0
        %1419 = vmatprep.subr.bf16.mxu0 0
        %1420 = vmatpush1.bf16.msra.mxu0 0
        %1421 = vmatprep.subr.bf16.mxu0 0
        %1422 = vmatpush1.bf16.msra.mxu0 0
        %1423 = vmatprep.mubr.bf16.mxu0 0
        %1424 = vmatmul.mubr.bf16.gmra.mrb[0].mxu0 %v1335
        %v1425 = vpop.f32.mrb[0].mxu0
        %v1426 = vadd.f32 0.0, %v1425
        %v1427 = vpop.f32.mrb[0].mxu0
        %v1428 = vpop.f32.mrb[0].mxu0
        %v1429 = vadd.f32 0.0, %v1428
        %v1430 = vpop.f32.mrb[0].mxu0
        %1431 = vmatprep.mubr.bf16.mxu0 0
        %1432 = vmatmul.mubr.bf16.gmra.mrb[0].mxu0 %v1336
        %v1433 = vpop.f32.mrb[0].mxu0
        %v1434 = vadd.f32 0.0, %v1433
        %v1435 = vpop.f32.mrb[0].mxu0
        %v1436 = vpop.f32.mrb[0].mxu0
        %v1437 = vadd.f32 0.0, %v1436
        %v1438 = vpop.f32.mrb[0].mxu0
        %1439 = vmatprep.mubr.bf16.mxu0 0
        %1440 = vmatmul.mubr.bf16.gmra.mrb[0].mxu0 %v1337
        %v1441 = vpop.f32.mrb[0].mxu0
        %v1442 = vadd.f32 0.0, %v1441
        %v1443 = vpop.f32.mrb[0].mxu0
        %v1444 = vpop.f32.mrb[0].mxu0
        %v1445 = vadd.f32 0.0, %v1444
        %v1446 = vpop.f32.mrb[0].mxu0
        %1447 = vmatprep.mubr.bf16.mxu0 0
        %1448 = vmatmul.mubr.bf16.gmra.mrb[0].mxu0 %v1338
        %v1449 = vpop.f32.mrb[0].mxu0
        %v1450 = vadd.f32 0.0, %v1449
        %v1451 = vpop.f32.mrb[0].mxu0
        %v1452 = vpop.f32.mrb[0].mxu0
        %v1453 = vadd.f32 0.0, %v1452
        %v1454 = vpop.f32.mrb[0].mxu0
        %1455 = vmatprep.mubr.bf16.mxu0 0
        %1456 = vmatmul.mubr.bf16.gmra.mrb[0].mxu0 %v1339
        %v1457 = vpop.f32.mrb[0].mxu0
        %v1458 = vadd.f32 0.0, %v1457
        %v1459 = vpop.f32.mrb[0].mxu0
        %v1460 = vpop.f32.mrb[0].mxu0
        %v1461 = vadd.f32 0.0, %v1460
        %v1462 = vpop.f32.mrb[0].mxu0
        %1463 = vmatprep.mubr.bf16.mxu0 0
        %1464 = vmatmul.mubr.bf16.gmra.mrb[0].mxu0 %v1340
        %v1465 = vpop.f32.mrb[0].mxu0
        %v1466 = vadd.f32 0.0, %v1465
        %v1467 = vpop.f32.mrb[0].mxu0
        %v1468 = vpop.f32.mrb[0].mxu0
        %v1469 = vadd.f32 0.0, %v1468
        %v1470 = vpop.f32.mrb[0].mxu0
        %1471 = vmatprep.mubr.bf16.mxu0 0
        %1472 = vmatmul.mubr.bf16.gmra.mrb[0].mxu0 %v1341
        %v1473 = vpop.f32.mrb[0].mxu0
        %v1474 = vadd.f32 0.0, %v1473
        %v1475 = vpop.f32.mrb[0].mxu0
        %v1476 = vpop.f32.mrb[0].mxu0
        %v1477 = vadd.f32 0.0, %v1476
        %v1478 = vpop.f32.mrb[0].mxu0
        %1479 = vmatprep.mubr.bf16.mxu0 0
        %1480 = vmatmul.mubr.bf16.gmra.mrb[0].mxu0 %v1342
        %v1481 = vpop.f32.mrb[0].mxu0
        %v1482 = vadd.f32 0.0, %v1481
        %v1483 = vpop.f32.mrb[0].mxu0
        %v1484 = vpop.f32.mrb[0].mxu0
        %v1485 = vadd.f32 0.0, %v1484
        %v1486 = vpop.f32.mrb[0].mxu0
        %1487 = vdwg.mxu0
        %v1488 = vmax.f32 %v506, 0.0
        %v1489 = vmax.f32 %v510, 0.0
        %v1490 = vmax.f32 %v516, 0.0
        %v1491 = vmax.f32 %v520, 0.0
        %v1492 = vmax.f32 %v526, 0.0
        %v1493 = vmax.f32 %v530, 0.0
        %v1494 = vmax.f32 %v536, 0.0
        %v1495 = vmax.f32 %v540, 0.0
        %v1496 = vmax.f32 %v546, 0.0
        %v1497 = vmax.f32 %v550, 0.0
        %v1498 = vmax.f32 %v556, 0.0
        %v1499 = vmax.f32 %v560, 0.0
        %v1500 = vmax.f32 %v566, 0.0
        %v1501 = vmax.f32 %v570, 0.0
        %v1502 = vmax.f32 %v576, 0.0
        %v1503 = vmax.f32 %v580, 0.0
        %v1504 = vadd.f32 %v506, %v1426
        %v1505 = vadd.f32 %v510, %v1429
        %v1506 = vadd.f32 %v516, %v1434
        %v1507 = vadd.f32 %v520, %v1437
        %v1508 = vadd.f32 %v526, %v1442
        %v1509 = vadd.f32 %v530, %v1445
        %v1510 = vadd.f32 %v536, %v1450
        %v1511 = vadd.f32 %v540, %v1453
        %v1512 = vadd.f32 %v546, %v1458
        %v1513 = vadd.f32 %v550, %v1461
        %v1514 = vadd.f32 %v556, %v1466
        %v1515 = vadd.f32 %v560, %v1469
        %v1516 = vadd.f32 %v566, %v1474
        %v1517 = vadd.f32 %v570, %v1477
        %v1518 = vadd.f32 %v576, %v1482
        %v1519 = vadd.f32 %v580, %v1485
        %v1520 = vmax.f32 %v1504, 0.0
        %v1521 = vmax.f32 %v1505, 0.0
        %v1522 = vmax.f32 %v1506, 0.0
        %v1523 = vmax.f32 %v1507, 0.0
        %v1524 = vmax.f32 %v1508, 0.0
        %v1525 = vmax.f32 %v1509, 0.0
        %v1526 = vmax.f32 %v1510, 0.0
        %v1527 = vmax.f32 %v1511, 0.0
        %v1528 = vmax.f32 %v1512, 0.0
        %v1529 = vmax.f32 %v1513, 0.0
        %v1530 = vmax.f32 %v1514, 0.0
        %v1531 = vmax.f32 %v1515, 0.0
        %v1532 = vmax.f32 %v1516, 0.0
        %v1533 = vmax.f32 %v1517, 0.0
        %v1534 = vmax.f32 %v1518, 0.0
        %v1535 = vmax.f32 %v1519, 0.0
        %1552 = vrot.lane.b32.xlu0 %v1488, 96
        %v1553 = vpop.permute.xlu0 %1552
        %1554 = vrot.lane.b32.xlu0 %v1489, 96
        %v1555 = vpop.permute.xlu0 %1554
        %1556 = vrot.lane.b32.xlu0 %v1490, 96
        %v1557 = vpop.permute.xlu0 %1556
        %1558 = vrot.lane.b32.xlu0 %v1491, 96
        %v1559 = vpop.permute.xlu0 %1558
        %1560 = vrot.lane.b32.xlu0 %v1492, 96
        %v1561 = vpop.permute.xlu0 %1560
        %1562 = vrot.lane.b32.xlu0 %v1493, 96
        %v1563 = vpop.permute.xlu0 %1562
        %1564 = vrot.lane.b32.xlu0 %v1494, 96
        %v1565 = vpop.permute.xlu0 %1564
        %1566 = vrot.lane.b32.xlu0 %v1495, 96
        %v1567 = vpop.permute.xlu0 %1566
        %1568 = vrot.lane.b32.xlu0 %v1496, 96
        %v1569 = vpop.permute.xlu0 %1568
        %1570 = vrot.lane.b32.xlu0 %v1497, 96
        %v1571 = vpop.permute.xlu0 %1570
        %1572 = vrot.lane.b32.xlu0 %v1498, 96
        %v1573 = vpop.permute.xlu0 %1572
        %1574 = vrot.lane.b32.xlu0 %v1499, 96
        %v1575 = vpop.permute.xlu0 %1574
        %1576 = vrot.lane.b32.xlu0 %v1500, 96
        %v1577 = vpop.permute.xlu0 %1576
        %1578 = vrot.lane.b32.xlu0 %v1501, 96
        %v1579 = vpop.permute.xlu0 %1578
        %1580 = vrot.lane.b32.xlu0 %v1502, 96
        %v1581 = vpop.permute.xlu0 %1580
        %1582 = vrot.lane.b32.xlu0 %v1503, 96
        %v1583 = vpop.permute.xlu0 %1582
        %1616 = vrot.lane.b32.xlu0 %v1520, 32
        %v1617 = vpop.permute.xlu0 %1616
        %1618 = vrot.lane.b32.xlu0 %v1521, 32
        %v1619 = vpop.permute.xlu0 %1618
        %1620 = vrot.lane.b32.xlu0 %v1522, 32
        %v1621 = vpop.permute.xlu0 %1620
        %1622 = vrot.lane.b32.xlu0 %v1523, 32
        %v1623 = vpop.permute.xlu0 %1622
        %1624 = vrot.lane.b32.xlu0 %v1524, 32
        %v1625 = vpop.permute.xlu0 %1624
        %1626 = vrot.lane.b32.xlu0 %v1525, 32
        %v1627 = vpop.permute.xlu0 %1626
        %1628 = vrot.lane.b32.xlu0 %v1526, 32
        %v1629 = vpop.permute.xlu0 %1628
        %1630 = vrot.lane.b32.xlu0 %v1527, 32
        %v1631 = vpop.permute.xlu0 %1630
        %1632 = vrot.lane.b32.xlu0 %v1528, 32
        %v1633 = vpop.permute.xlu0 %1632
        %1634 = vrot.lane.b32.xlu0 %v1529, 32
        %v1635 = vpop.permute.xlu0 %1634
        %1636 = vrot.lane.b32.xlu0 %v1530, 32
        %v1637 = vpop.permute.xlu0 %1636
        %1638 = vrot.lane.b32.xlu0 %v1531, 32
        %v1639 = vpop.permute.xlu0 %1638
        %1640 = vrot.lane.b32.xlu0 %v1532, 32
        %v1641 = vpop.permute.xlu0 %1640
        %1642 = vrot.lane.b32.xlu0 %v1533, 32
        %v1643 = vpop.permute.xlu0 %1642
        %1644 = vrot.lane.b32.xlu0 %v1534, 32
        %v1645 = vpop.permute.xlu0 %1644
        %1646 = vrot.lane.b32.xlu0 %v1535, 32
        %v1647 = vpop.permute.xlu0 %1646
        %1680 = vrot.lane.b32.xlu0 %v257, 64
        %v1681 = vpop.permute.xlu0 %1680
        %1682 = vrot.lane.b32.xlu0 %v258, 64
        %v1683 = vpop.permute.xlu0 %1682
        %1684 = vrot.lane.b32.xlu0 %v259, 64
        %v1685 = vpop.permute.xlu0 %1684
        %1686 = vrot.lane.b32.xlu0 %v260, 64
        %v1687 = vpop.permute.xlu0 %1686
        %1688 = vrot.lane.b32.xlu0 %v261, 64
        %v1689 = vpop.permute.xlu0 %1688
        %1690 = vrot.lane.b32.xlu0 %v262, 64
        %v1691 = vpop.permute.xlu0 %1690
        %1692 = vrot.lane.b32.xlu0 %v263, 64
        %v1693 = vpop.permute.xlu0 %1692
        %1694 = vrot.lane.b32.xlu0 %v264, 64
        %v1695 = vpop.permute.xlu0 %1694
        %1696 = vrot.lane.b32.xlu0 %v265, 64
        %v1697 = vpop.permute.xlu0 %1696
        %1698 = vrot.lane.b32.xlu0 %v266, 64
        %v1699 = vpop.permute.xlu0 %1698
        %1700 = vrot.lane.b32.xlu0 %v267, 64
        %v1701 = vpop.permute.xlu0 %1700
        %1702 = vrot.lane.b32.xlu0 %v268, 64
        %v1703 = vpop.permute.xlu0 %1702
        %1704 = vrot.lane.b32.xlu0 %v269, 64
        %v1705 = vpop.permute.xlu0 %1704
        %1706 = vrot.lane.b32.xlu0 %v270, 64
        %v1707 = vpop.permute.xlu0 %1706
        %1708 = vrot.lane.b32.xlu0 %v271, 64
        %v1709 = vpop.permute.xlu0 %1708
        %1710 = vrot.lane.b32.xlu0 %v272, 64
        %v1711 = vpop.permute.xlu0 %1710
        %vm1728 = vcmask 261120
        %v1729 = vsel %vm1728, %v1553, %v1617
        %v1730 = vsel %vm1728, %v1555, %v1619
        %v1731 = vsel %vm1728, %v1557, %v1621
        %v1732 = vsel %vm1728, %v1559, %v1623
        %v1733 = vsel %vm1728, %v1561, %v1625
        %v1734 = vsel %vm1728, %v1563, %v1627
        %v1735 = vsel %vm1728, %v1565, %v1629
        %v1736 = vsel %vm1728, %v1567, %v1631
        %v1737 = vsel %vm1728, %v1569, %v1633
        %v1738 = vsel %vm1728, %v1571, %v1635
        %v1739 = vsel %vm1728, %v1573, %v1637
        %v1740 = vsel %vm1728, %v1575, %v1639
        %v1741 = vsel %vm1728, %v1577, %v1641
        %v1742 = vsel %vm1728, %v1579, %v1643
        %v1743 = vsel %vm1728, %v1581, %v1645
        %v1744 = vsel %vm1728, %v1583, %v1647
        %v1745 = vsel %vm702, %v1729, %v1681
        %v1746 = vsel %vm702, %v1730, %v1683
        %v1747 = vsel %vm702, %v1731, %v1685
        %v1748 = vsel %vm702, %v1732, %v1687
        %v1749 = vsel %vm702, %v1733, %v1689
        %v1750 = vsel %vm702, %v1734, %v1691
        %v1751 = vsel %vm702, %v1735, %v1693
        %v1752 = vsel %vm702, %v1736, %v1695
        %v1753 = vsel %vm702, %v1737, %v1697
        %v1754 = vsel %vm702, %v1738, %v1699
        %v1755 = vsel %vm702, %v1739, %v1701
        %v1756 = vsel %vm702, %v1740, %v1703
        %v1757 = vsel %vm702, %v1741, %v1705
        %v1758 = vsel %vm702, %v1742, %v1707
        %v1759 = vsel %vm702, %v1743, %v1709
        %v1760 = vsel %vm702, %v1744, %v1711
        %v1761 = vld [vmem:[%s2 + $0x190] sm:$0xf]
        %v1762 = vld [vmem:[%s2 + $0x198] sm:$0xf]
        %v1763 = vld [vmem:[%s2 + $0x1a0] sm:$0xf]
        %v1764 = vld [vmem:[%s2 + $0x1a8] sm:$0xf]
        %v1765 = vld [vmem:[%s2 + $0x1b0] sm:$0xf]
        %v1766 = vld [vmem:[%s2 + $0x1b8] sm:$0xf]
        %v1767 = vld [vmem:[%s2 + $0x1c0] sm:$0xf]
        %v1768 = vld [vmem:[%s2 + $0x1c8] sm:$0xf]
        %v1769 = vld [vmem:[%s2 + $0x1d0] sm:$0xf]
        %v1770 = vld [vmem:[%s2 + $0x1d8] sm:$0xf]
        %v1771 = vld [vmem:[%s2 + $0x1e0] sm:$0xf]
        %v1772 = vld [vmem:[%s2 + $0x1e8] sm:$0xf]
        %v1773 = vpack.c.bf16 %v1746, %v1745
        %v1774 = vpack.c.bf16 %v1748, %v1747
        %v1775 = vpack.c.bf16 %v1750, %v1749
        %v1776 = vpack.c.bf16 %v1752, %v1751
        %v1777 = vpack.c.bf16 %v1754, %v1753
        %v1778 = vpack.c.bf16 %v1756, %v1755
        %v1779 = vpack.c.bf16 %v1758, %v1757
        %v1780 = vpack.c.bf16 %v1760, %v1759
        %v1781 = vlaneseq
        %v1782 = vshrl.u32 %v1781, 7
        %v1783 = vsub.s32 3, %v1782
        %v1784 = vrot.slane %v273, %v1783
        %v1797 = vunpack.c.l.b16 %v1761
        %v1798 = vunpack.c.l.b16 %v1762
        %v1799 = vunpack.c.l.b16 %v1763
        %v1800 = vunpack.c.l.b16 %v1764
        %v1801 = vunpack.c.l.b16 %v1765
        %v1802 = vunpack.c.l.b16 %v1766
        %v1803 = vunpack.c.l.b16 %v1767
        %v1804 = vunpack.c.l.b16 %v1768
        %v1805 = vunpack.c.l.b16 %v1769
        %v1806 = vunpack.c.l.b16 %v1770
        %v1807 = vunpack.c.l.b16 %v1771
        %v1808 = vunpack.c.l.b16 %v1772
        %v1809 = vpack.c.b16 %v1798, %v1797
        %v1810 = vpack.c.b16 %v1800, %v1799
        %v1811 = vpack.c.b16 %v1802, %v1801
        %v1812 = vpack.c.b16 %v1804, %v1803
        %v1813 = vpack.c.b16 %v1806, %v1805
        %v1814 = vpack.c.b16 %v1808, %v1807
        %vm1821 = vcmask 785408
        %v1823 = vsel %vm1821, %v1773, 0
        %v1826 = vsel %vm1821, %v1774, 0
        %v1829 = vsel %vm1821, %v1775, 0
        %v1832 = vsel %vm1821, %v1776, 0
        %v1835 = vsel %vm1821, %v1777, 0
        %v1838 = vsel %vm1821, %v1778, 0
        %v1841 = vsel %vm1821, %v1779, 0
        %v1844 = vsel %vm1821, %v1780, 0
        %1846 = vmatprep.subr.bf16.mxu0 0
        %1847 = vmatpush1.bf16.msra.mxu0 %v1809
        %1848 = vmatprep.subr.bf16.mxu0 0
        %1849 = vmatpush1.bf16.msra.mxu0 %v1810
        %1850 = vmatprep.subr.bf16.mxu0 0
        %1851 = vmatpush1.bf16.msra.mxu0 %v1811
        %1852 = vmatprep.subr.bf16.mxu0 0
        %1853 = vmatpush1.bf16.msra.mxu0 %v1812
        %1854 = vmatprep.subr.bf16.mxu0 0
        %1855 = vmatpush1.bf16.msra.mxu0 %v1813
        %1856 = vmatprep.subr.bf16.mxu0 0
        %1857 = vmatpush1.bf16.msra.mxu0 %v1814
        %1858 = vmatprep.subr.bf16.mxu0 0
        %1859 = vmatpush1.bf16.msra.mxu0 0
        %1860 = vmatprep.subr.bf16.mxu0 0
        %1861 = vmatpush1.bf16.msra.mxu0 0
        %1862 = vmatprep.subr.bf16.mxu0 0
        %1863 = vmatpush1.bf16.msra.mxu0 0
        %1864 = vmatprep.subr.bf16.mxu0 0
        %1865 = vmatpush1.bf16.msra.mxu0 0
        %1866 = vmatprep.subr.bf16.mxu0 0
        %1867 = vmatpush1.bf16.msra.mxu0 0
        %1868 = vmatprep.subr.bf16.mxu0 0
        %1869 = vmatpush1.bf16.msra.mxu0 0
        %1870 = vmatprep.subr.bf16.mxu0 0
        %1871 = vmatpush1.bf16.msra.mxu0 0
        %1872 = vmatprep.subr.bf16.mxu0 0
        %1873 = vmatpush1.bf16.msra.mxu0 0
        %1874 = vmatprep.subr.bf16.mxu0 0
        %1875 = vmatpush1.bf16.msra.mxu0 0
        %1876 = vmatprep.subr.bf16.mxu0 0
        %1877 = vmatpush1.bf16.msra.mxu0 0
        %1878 = vmatprep.mubr.bf16.mxu0 0
        %1879 = vmatmul.mubr.bf16.gmra.mrb[0].mxu0 %v1823
        %v1880 = vpop.f32.mrb[0].mxu0
        %v1881 = vadd.f32 %v1784, %v1880
        %v1882 = vpop.f32.mrb[0].mxu0
        %v1883 = vpop.f32.mrb[0].mxu0
        %v1884 = vadd.f32 %v1784, %v1883
        %v1885 = vpop.f32.mrb[0].mxu0
        %1886 = vmatprep.mubr.bf16.mxu0 0
        %1887 = vmatmul.mubr.bf16.gmra.mrb[0].mxu0 %v1826
        %v1888 = vpop.f32.mrb[0].mxu0
        %v1889 = vadd.f32 %v1784, %v1888
        %v1890 = vpop.f32.mrb[0].mxu0
        %v1891 = vpop.f32.mrb[0].mxu0
        %v1892 = vadd.f32 %v1784, %v1891
        %v1893 = vpop.f32.mrb[0].mxu0
        %1894 = vmatprep.mubr.bf16.mxu0 0
        %1895 = vmatmul.mubr.bf16.gmra.mrb[0].mxu0 %v1829
        %v1896 = vpop.f32.mrb[0].mxu0
        %v1897 = vadd.f32 %v1784, %v1896
        %v1898 = vpop.f32.mrb[0].mxu0
        %v1899 = vpop.f32.mrb[0].mxu0
        %v1900 = vadd.f32 %v1784, %v1899
        %v1901 = vpop.f32.mrb[0].mxu0
        %1902 = vmatprep.mubr.bf16.mxu0 0
        %1903 = vmatmul.mubr.bf16.gmra.mrb[0].mxu0 %v1832
        %v1904 = vpop.f32.mrb[0].mxu0
        %v1905 = vadd.f32 %v1784, %v1904
        %v1906 = vpop.f32.mrb[0].mxu0
        %v1907 = vpop.f32.mrb[0].mxu0
        %v1908 = vadd.f32 %v1784, %v1907
        %v1909 = vpop.f32.mrb[0].mxu0
        %1910 = vmatprep.mubr.bf16.mxu0 0
        %1911 = vmatmul.mubr.bf16.gmra.mrb[0].mxu0 %v1835
        %v1912 = vpop.f32.mrb[0].mxu0
        %v1913 = vadd.f32 %v1784, %v1912
        %v1914 = vpop.f32.mrb[0].mxu0
        %v1915 = vpop.f32.mrb[0].mxu0
        %v1916 = vadd.f32 %v1784, %v1915
        %v1917 = vpop.f32.mrb[0].mxu0
        %1918 = vmatprep.mubr.bf16.mxu0 0
        %1919 = vmatmul.mubr.bf16.gmra.mrb[0].mxu0 %v1838
        %v1920 = vpop.f32.mrb[0].mxu0
        %v1921 = vadd.f32 %v1784, %v1920
        %v1922 = vpop.f32.mrb[0].mxu0
        %v1923 = vpop.f32.mrb[0].mxu0
        %v1924 = vadd.f32 %v1784, %v1923
        %v1925 = vpop.f32.mrb[0].mxu0
        %1926 = vmatprep.mubr.bf16.mxu0 0
        %1927 = vmatmul.mubr.bf16.gmra.mrb[0].mxu0 %v1841
        %v1928 = vpop.f32.mrb[0].mxu0
        %v1929 = vadd.f32 %v1784, %v1928
        %v1930 = vpop.f32.mrb[0].mxu0
        %v1931 = vpop.f32.mrb[0].mxu0
        %v1932 = vadd.f32 %v1784, %v1931
        %v1933 = vpop.f32.mrb[0].mxu0
        %1934 = vmatprep.mubr.bf16.mxu0 0
        %1935 = vmatmul.mubr.bf16.gmra.mrb[0].mxu0 %v1844
        %v1936 = vpop.f32.mrb[0].mxu0
        %v1937 = vadd.f32 %v1784, %v1936
        %v1938 = vpop.f32.mrb[0].mxu0
        %v1939 = vpop.f32.mrb[0].mxu0
        %v1940 = vadd.f32 %v1784, %v1939
        %v1941 = vpop.f32.mrb[0].mxu0
        %1942 = vdwg.mxu0
        %v1943 = vxor.u32 %v1881, 2147483648
        %v1944 = vxor.u32 %v1884, 2147483648
        %v1945 = vxor.u32 %v1889, 2147483648
        %v1946 = vxor.u32 %v1892, 2147483648
        %v1947 = vxor.u32 %v1897, 2147483648
        %v1948 = vxor.u32 %v1900, 2147483648
        %v1949 = vxor.u32 %v1905, 2147483648
        %v1950 = vxor.u32 %v1908, 2147483648
        %v1951 = vxor.u32 %v1913, 2147483648
        %v1952 = vxor.u32 %v1916, 2147483648
        %v1953 = vxor.u32 %v1921, 2147483648
        %v1954 = vxor.u32 %v1924, 2147483648
        %v1955 = vxor.u32 %v1929, 2147483648
        %v1956 = vxor.u32 %v1932, 2147483648
        %v1957 = vxor.u32 %v1937, 2147483648
        %v1958 = vxor.u32 %v1940, 2147483648
        %v1959 = vmul.f32 %v1943, 1.442695
        %v1960 = vpow.pop %v1959
        %v1961 = vmul.f32 %v1944, 1.442695
        %v1962 = vpow.pop %v1961
        %v1963 = vmul.f32 %v1945, 1.442695
        %v1964 = vpow.pop %v1963
        %v1965 = vmul.f32 %v1946, 1.442695
        %v1966 = vpow.pop %v1965
        %v1967 = vmul.f32 %v1947, 1.442695
        %v1968 = vpow.pop %v1967
        %v1969 = vmul.f32 %v1948, 1.442695
        %v1970 = vpow.pop %v1969
        %v1971 = vmul.f32 %v1949, 1.442695
        %v1972 = vpow.pop %v1971
        %v1973 = vmul.f32 %v1950, 1.442695
        %v1974 = vpow.pop %v1973
        %v1975 = vmul.f32 %v1951, 1.442695
        %v1976 = vpow.pop %v1975
        %v1977 = vmul.f32 %v1952, 1.442695
        %v1978 = vpow.pop %v1977
        %v1979 = vmul.f32 %v1953, 1.442695
        %v1980 = vpow.pop %v1979
        %v1981 = vmul.f32 %v1954, 1.442695
        %v1982 = vpow.pop %v1981
        %v1983 = vmul.f32 %v1955, 1.442695
        %v1984 = vpow.pop %v1983
        %v1985 = vmul.f32 %v1956, 1.442695
        %v1986 = vpow.pop %v1985
        %v1987 = vmul.f32 %v1957, 1.442695
        %v1988 = vpow.pop %v1987
        %v1989 = vmul.f32 %v1958, 1.442695
        %v1990 = vpow.pop %v1989
        %v1991 = vadd.f32 %v1960, 1.0
        %v1992 = vadd.f32 %v1962, 1.0
        %v1993 = vadd.f32 %v1964, 1.0
        %v1994 = vadd.f32 %v1966, 1.0
        %v1995 = vadd.f32 %v1968, 1.0
        %v1996 = vadd.f32 %v1970, 1.0
        %v1997 = vadd.f32 %v1972, 1.0
        %v1998 = vadd.f32 %v1974, 1.0
        %v1999 = vadd.f32 %v1976, 1.0
        %v2000 = vadd.f32 %v1978, 1.0
        %v2001 = vadd.f32 %v1980, 1.0
        %v2002 = vadd.f32 %v1982, 1.0
        %v2003 = vadd.f32 %v1984, 1.0
        %v2004 = vadd.f32 %v1986, 1.0
        %v2005 = vadd.f32 %v1988, 1.0
        %v2006 = vadd.f32 %v1990, 1.0
        %v2007 = vrcp.pop %v1991
        %v2008 = vmul.f32 1.0, %v2007
        %v2009 = vrcp.pop %v1992
        %v2010 = vmul.f32 1.0, %v2009
        %v2011 = vrcp.pop %v1993
        %v2012 = vmul.f32 1.0, %v2011
        %v2013 = vrcp.pop %v1994
        %v2014 = vmul.f32 1.0, %v2013
        %v2015 = vrcp.pop %v1995
        %v2016 = vmul.f32 1.0, %v2015
        %v2017 = vrcp.pop %v1996
        %v2018 = vmul.f32 1.0, %v2017
        %v2019 = vrcp.pop %v1997
        %v2020 = vmul.f32 1.0, %v2019
        %v2021 = vrcp.pop %v1998
        %v2022 = vmul.f32 1.0, %v2021
        %v2023 = vrcp.pop %v1999
        %v2024 = vmul.f32 1.0, %v2023
        %v2025 = vrcp.pop %v2000
        %v2026 = vmul.f32 1.0, %v2025
        %v2027 = vrcp.pop %v2001
        %v2028 = vmul.f32 1.0, %v2027
        %v2029 = vrcp.pop %v2002
        %v2030 = vmul.f32 1.0, %v2029
        %v2031 = vrcp.pop %v2003
        %v2032 = vmul.f32 1.0, %v2031
        %v2033 = vrcp.pop %v2004
        %v2034 = vmul.f32 1.0, %v2033
        %v2035 = vrcp.pop %v2005
        %v2036 = vmul.f32 1.0, %v2035
        %v2037 = vrcp.pop %v2006
        %v2038 = vmul.f32 1.0, %v2037
        %2055 = vrot.lane.b32.xlu0 %v2008, 96
        %v2056 = vpop.permute.xlu0 %2055
        %2057 = vrot.lane.b32.xlu0 %v2010, 96
        %v2058 = vpop.permute.xlu0 %2057
        %2059 = vrot.lane.b32.xlu0 %v2012, 96
        %v2060 = vpop.permute.xlu0 %2059
        %2061 = vrot.lane.b32.xlu0 %v2014, 96
        %v2062 = vpop.permute.xlu0 %2061
        %2063 = vrot.lane.b32.xlu0 %v2016, 96
        %v2064 = vpop.permute.xlu0 %2063
        %2065 = vrot.lane.b32.xlu0 %v2018, 96
        %v2066 = vpop.permute.xlu0 %2065
        %2067 = vrot.lane.b32.xlu0 %v2020, 96
        %v2068 = vpop.permute.xlu0 %2067
        %2069 = vrot.lane.b32.xlu0 %v2022, 96
        %v2070 = vpop.permute.xlu0 %2069
        %2071 = vrot.lane.b32.xlu0 %v2024, 96
        %v2072 = vpop.permute.xlu0 %2071
        %2073 = vrot.lane.b32.xlu0 %v2026, 96
        %v2074 = vpop.permute.xlu0 %2073
        %2075 = vrot.lane.b32.xlu0 %v2028, 96
        %v2076 = vpop.permute.xlu0 %2075
        %2077 = vrot.lane.b32.xlu0 %v2030, 96
        %v2078 = vpop.permute.xlu0 %2077
        %2079 = vrot.lane.b32.xlu0 %v2032, 96
        %v2080 = vpop.permute.xlu0 %2079
        %2081 = vrot.lane.b32.xlu0 %v2034, 96
        %v2082 = vpop.permute.xlu0 %2081
        %2083 = vrot.lane.b32.xlu0 %v2036, 96
        %v2084 = vpop.permute.xlu0 %2083
        %2085 = vrot.lane.b32.xlu0 %v2038, 96
        %v2086 = vpop.permute.xlu0 %2085
        %v2103 = vmul.f32 %v257, %v2056
        %v2104 = vmul.f32 %v258, %v2058
        %v2105 = vmul.f32 %v259, %v2060
        %v2106 = vmul.f32 %v260, %v2062
        %v2107 = vmul.f32 %v261, %v2064
        %v2108 = vmul.f32 %v262, %v2066
        %v2109 = vmul.f32 %v263, %v2068
        %v2110 = vmul.f32 %v264, %v2070
        %v2111 = vmul.f32 %v265, %v2072
        %v2112 = vmul.f32 %v266, %v2074
        %v2113 = vmul.f32 %v267, %v2076
        %v2114 = vmul.f32 %v268, %v2078
        %v2115 = vmul.f32 %v269, %v2080
        %v2116 = vmul.f32 %v270, %v2082
        %v2117 = vmul.f32 %v271, %v2084
        %v2118 = vmul.f32 %v272, %v2086
        %v2119 = vld [vmem:[%s2 + $0x1f0] sm:$0xf]
        %v2120 = vld [vmem:[%s2 + $0x1f8] sm:$0xf]
        %v2121 = vld [vmem:[%s2 + $0x200] sm:$0xf]
        %v2122 = vld [vmem:[%s2 + $0x208] sm:$0xf]
        %v2123 = vpack.c.bf16 %v2104, %v2103
        %v2124 = vpack.c.bf16 %v2106, %v2105
        %v2125 = vpack.c.bf16 %v2108, %v2107
        %v2126 = vpack.c.bf16 %v2110, %v2109
        %v2127 = vpack.c.bf16 %v2112, %v2111
        %v2128 = vpack.c.bf16 %v2114, %v2113
        %v2129 = vpack.c.bf16 %v2116, %v2115
        %v2130 = vpack.c.bf16 %v2118, %v2117
        %v2135 = vunpack.c.l.b16 %v2119
        %v2136 = vunpack.c.l.b16 %v2120
        %v2137 = vunpack.c.l.b16 %v2121
        %v2138 = vunpack.c.l.b16 %v2122
        %v2139 = vpack.c.b16 %v2136, %v2135
        %v2140 = vpack.c.b16 %v2138, %v2137
        %v2144 = vsel %vm1728, %v2123, 0
        %v2147 = vsel %vm1728, %v2124, 0
        %v2150 = vsel %vm1728, %v2125, 0
        %v2153 = vsel %vm1728, %v2126, 0
        %v2156 = vsel %vm1728, %v2127, 0
        %v2159 = vsel %vm1728, %v2128, 0
        %v2162 = vsel %vm1728, %v2129, 0
        %v2165 = vsel %vm1728, %v2130, 0
        %2167 = vmatprep.subr.bf16.mxu0 0
        %2168 = vmatpush1.bf16.msra.mxu0 %v2139
        %2169 = vmatprep.subr.bf16.mxu0 0
        %2170 = vmatpush1.bf16.msra.mxu0 %v2140
        %2171 = vmatprep.subr.bf16.mxu0 0
        %2172 = vmatpush1.bf16.msra.mxu0 0
        %2173 = vmatprep.subr.bf16.mxu0 0
        %2174 = vmatpush1.bf16.msra.mxu0 0
        %2175 = vmatprep.subr.bf16.mxu0 0
        %2176 = vmatpush1.bf16.msra.mxu0 0
        %2177 = vmatprep.subr.bf16.mxu0 0
        %2178 = vmatpush1.bf16.msra.mxu0 0
        %2179 = vmatprep.subr.bf16.mxu0 0
        %2180 = vmatpush1.bf16.msra.mxu0 0
        %2181 = vmatprep.subr.bf16.mxu0 0
        %2182 = vmatpush1.bf16.msra.mxu0 0
        %2183 = vmatprep.subr.bf16.mxu0 0
        %2184 = vmatpush1.bf16.msra.mxu0 0
        %2185 = vmatprep.subr.bf16.mxu0 0
        %2186 = vmatpush1.bf16.msra.mxu0 0
        %2187 = vmatprep.subr.bf16.mxu0 0
        %2188 = vmatpush1.bf16.msra.mxu0 0
        %2189 = vmatprep.subr.bf16.mxu0 0
        %2190 = vmatpush1.bf16.msra.mxu0 0
        %2191 = vmatprep.subr.bf16.mxu0 0
        %2192 = vmatpush1.bf16.msra.mxu0 0
        %2193 = vmatprep.subr.bf16.mxu0 0
        %2194 = vmatpush1.bf16.msra.mxu0 0
        %2195 = vmatprep.subr.bf16.mxu0 0
        %2196 = vmatpush1.bf16.msra.mxu0 0
        %2197 = vmatprep.subr.bf16.mxu0 0
        %2198 = vmatpush1.bf16.msra.mxu0 0
        %2199 = vmatprep.mubr.bf16.mxu0 0
        %2200 = vmatmul.mubr.bf16.gmra.mrb[0].mxu0 %v2144
        %v2201 = vpop.f32.mrb[0].mxu0
        %v2202 = vadd.f32 0.0, %v2201
        %v2203 = vpop.f32.mrb[0].mxu0
        %v2204 = vpop.f32.mrb[0].mxu0
        %v2205 = vadd.f32 0.0, %v2204
        %v2206 = vpop.f32.mrb[0].mxu0
        %2207 = vmatprep.mubr.bf16.mxu0 0
        %2208 = vmatmul.mubr.bf16.gmra.mrb[0].mxu0 %v2147
        %v2209 = vpop.f32.mrb[0].mxu0
        %v2210 = vadd.f32 0.0, %v2209
        %v2211 = vpop.f32.mrb[0].mxu0
        %v2212 = vpop.f32.mrb[0].mxu0
        %v2213 = vadd.f32 0.0, %v2212
        %v2214 = vpop.f32.mrb[0].mxu0
        %2215 = vmatprep.mubr.bf16.mxu0 0
        %2216 = vmatmul.mubr.bf16.gmra.mrb[0].mxu0 %v2150
        %v2217 = vpop.f32.mrb[0].mxu0
        %v2218 = vadd.f32 0.0, %v2217
        %v2219 = vpop.f32.mrb[0].mxu0
        %v2220 = vpop.f32.mrb[0].mxu0
        %v2221 = vadd.f32 0.0, %v2220
        %v2222 = vpop.f32.mrb[0].mxu0
        %2223 = vmatprep.mubr.bf16.mxu0 0
        %2224 = vmatmul.mubr.bf16.gmra.mrb[0].mxu0 %v2153
        %v2225 = vpop.f32.mrb[0].mxu0
        %v2226 = vadd.f32 0.0, %v2225
        %v2227 = vpop.f32.mrb[0].mxu0
        %v2228 = vpop.f32.mrb[0].mxu0
        %v2229 = vadd.f32 0.0, %v2228
        %v2230 = vpop.f32.mrb[0].mxu0
        %2231 = vmatprep.mubr.bf16.mxu0 0
        %2232 = vmatmul.mubr.bf16.gmra.mrb[0].mxu0 %v2156
        %v2233 = vpop.f32.mrb[0].mxu0
        %v2234 = vadd.f32 0.0, %v2233
        %v2235 = vpop.f32.mrb[0].mxu0
        %v2236 = vpop.f32.mrb[0].mxu0
        %v2237 = vadd.f32 0.0, %v2236
        %v2238 = vpop.f32.mrb[0].mxu0
        %2239 = vmatprep.mubr.bf16.mxu0 0
        %2240 = vmatmul.mubr.bf16.gmra.mrb[0].mxu0 %v2159
        %v2241 = vpop.f32.mrb[0].mxu0
        %v2242 = vadd.f32 0.0, %v2241
        %v2243 = vpop.f32.mrb[0].mxu0
        %v2244 = vpop.f32.mrb[0].mxu0
        %v2245 = vadd.f32 0.0, %v2244
        %v2246 = vpop.f32.mrb[0].mxu0
        %2247 = vmatprep.mubr.bf16.mxu0 0
        %2248 = vmatmul.mubr.bf16.gmra.mrb[0].mxu0 %v2162
        %v2249 = vpop.f32.mrb[0].mxu0
        %v2250 = vadd.f32 0.0, %v2249
        %v2251 = vpop.f32.mrb[0].mxu0
        %v2252 = vpop.f32.mrb[0].mxu0
        %v2253 = vadd.f32 0.0, %v2252
        %v2254 = vpop.f32.mrb[0].mxu0
        %2255 = vmatprep.mubr.bf16.mxu0 0
        %2256 = vmatmul.mubr.bf16.gmra.mrb[0].mxu0 %v2165
        %v2257 = vpop.f32.mrb[0].mxu0
        %v2258 = vadd.f32 0.0, %v2257
        %v2259 = vpop.f32.mrb[0].mxu0
        %v2260 = vpop.f32.mrb[0].mxu0
        %v2261 = vadd.f32 0.0, %v2260
        %v2262 = vpop.f32.mrb[0].mxu0
        %2263 = vdwg.mxu0
        %2280 = vrot.lane.b32.xlu0 %v2202, 64
        %v2281 = vpop.permute.xlu0 %2280
        %2282 = vrot.lane.b32.xlu0 %v2205, 64
        %v2283 = vpop.permute.xlu0 %2282
        %2284 = vrot.lane.b32.xlu0 %v2210, 64
        %v2285 = vpop.permute.xlu0 %2284
        %2286 = vrot.lane.b32.xlu0 %v2213, 64
        %v2287 = vpop.permute.xlu0 %2286
        %2288 = vrot.lane.b32.xlu0 %v2218, 64
        %v2289 = vpop.permute.xlu0 %2288
        %2290 = vrot.lane.b32.xlu0 %v2221, 64
        %v2291 = vpop.permute.xlu0 %2290
        %2292 = vrot.lane.b32.xlu0 %v2226, 64
        %v2293 = vpop.permute.xlu0 %2292
        %2294 = vrot.lane.b32.xlu0 %v2229, 64
        %v2295 = vpop.permute.xlu0 %2294
        %2296 = vrot.lane.b32.xlu0 %v2234, 64
        %v2297 = vpop.permute.xlu0 %2296
        %2298 = vrot.lane.b32.xlu0 %v2237, 64
        %v2299 = vpop.permute.xlu0 %2298
        %2300 = vrot.lane.b32.xlu0 %v2242, 64
        %v2301 = vpop.permute.xlu0 %2300
        %2302 = vrot.lane.b32.xlu0 %v2245, 64
        %v2303 = vpop.permute.xlu0 %2302
        %2304 = vrot.lane.b32.xlu0 %v2250, 64
        %v2305 = vpop.permute.xlu0 %2304
        %2306 = vrot.lane.b32.xlu0 %v2253, 64
        %v2307 = vpop.permute.xlu0 %2306
        %2308 = vrot.lane.b32.xlu0 %v2258, 64
        %v2309 = vpop.permute.xlu0 %2308
        %2310 = vrot.lane.b32.xlu0 %v2261, 64
        %v2311 = vpop.permute.xlu0 %2310
        %v2328 = vadd.f32 %v1881, %v2281
        %v2329 = vadd.f32 %v1884, %v2283
        %v2330 = vadd.f32 %v1889, %v2285
        %v2331 = vadd.f32 %v1892, %v2287
        %v2332 = vadd.f32 %v1897, %v2289
        %v2333 = vadd.f32 %v1900, %v2291
        %v2334 = vadd.f32 %v1905, %v2293
        %v2335 = vadd.f32 %v1908, %v2295
        %v2336 = vadd.f32 %v1913, %v2297
        %v2337 = vadd.f32 %v1916, %v2299
        %v2338 = vadd.f32 %v1921, %v2301
        %v2339 = vadd.f32 %v1924, %v2303
        %v2340 = vadd.f32 %v1929, %v2305
        %v2341 = vadd.f32 %v1932, %v2307
        %v2342 = vadd.f32 %v1937, %v2309
        %v2343 = vadd.f32 %v1940, %v2311
        %v2344 = vtanh.pop %v2328
        %v2345 = vtanh.pop %v2329
        %v2346 = vtanh.pop %v2330
        %v2347 = vtanh.pop %v2331
        %v2348 = vtanh.pop %v2332
        %v2349 = vtanh.pop %v2333
        %v2350 = vtanh.pop %v2334
        %v2351 = vtanh.pop %v2335
        %v2352 = vtanh.pop %v2336
        %v2353 = vtanh.pop %v2337
        %v2354 = vtanh.pop %v2338
        %v2355 = vtanh.pop %v2339
        %v2356 = vtanh.pop %v2340
        %v2357 = vtanh.pop %v2341
        %v2358 = vtanh.pop %v2342
        %v2359 = vtanh.pop %v2343
        %v2360 = vsub.f32 1.0, %v2008
        %v2361 = vsub.f32 1.0, %v2010
        %v2362 = vsub.f32 1.0, %v2012
        %v2363 = vsub.f32 1.0, %v2014
        %v2364 = vsub.f32 1.0, %v2016
        %v2365 = vsub.f32 1.0, %v2018
        %v2366 = vsub.f32 1.0, %v2020
        %v2367 = vsub.f32 1.0, %v2022
        %v2368 = vsub.f32 1.0, %v2024
        %v2369 = vsub.f32 1.0, %v2026
        %v2370 = vsub.f32 1.0, %v2028
        %v2371 = vsub.f32 1.0, %v2030
        %v2372 = vsub.f32 1.0, %v2032
        %v2373 = vsub.f32 1.0, %v2034
        %v2374 = vsub.f32 1.0, %v2036
        %v2375 = vsub.f32 1.0, %v2038
        %2392 = vrot.lane.b32.xlu0 %v2344, 64
        %v2393 = vpop.permute.xlu0 %2392
        %2394 = vrot.lane.b32.xlu0 %v2345, 64
        %v2395 = vpop.permute.xlu0 %2394
        %2396 = vrot.lane.b32.xlu0 %v2346, 64
        %v2397 = vpop.permute.xlu0 %2396
        %2398 = vrot.lane.b32.xlu0 %v2347, 64
        %v2399 = vpop.permute.xlu0 %2398
        %2400 = vrot.lane.b32.xlu0 %v2348, 64
        %v2401 = vpop.permute.xlu0 %2400
        %2402 = vrot.lane.b32.xlu0 %v2349, 64
        %v2403 = vpop.permute.xlu0 %2402
        %2404 = vrot.lane.b32.xlu0 %v2350, 64
        %v2405 = vpop.permute.xlu0 %2404
        %2406 = vrot.lane.b32.xlu0 %v2351, 64
        %v2407 = vpop.permute.xlu0 %2406
        %2408 = vrot.lane.b32.xlu0 %v2352, 64
        %v2409 = vpop.permute.xlu0 %2408
        %2410 = vrot.lane.b32.xlu0 %v2353, 64
        %v2411 = vpop.permute.xlu0 %2410
        %2412 = vrot.lane.b32.xlu0 %v2354, 64
        %v2413 = vpop.permute.xlu0 %2412
        %2414 = vrot.lane.b32.xlu0 %v2355, 64
        %v2415 = vpop.permute.xlu0 %2414
        %2416 = vrot.lane.b32.xlu0 %v2356, 64
        %v2417 = vpop.permute.xlu0 %2416
        %2418 = vrot.lane.b32.xlu0 %v2357, 64
        %v2419 = vpop.permute.xlu0 %2418
        %2420 = vrot.lane.b32.xlu0 %v2358, 64
        %v2421 = vpop.permute.xlu0 %2420
        %2422 = vrot.lane.b32.xlu0 %v2359, 64
        %v2423 = vpop.permute.xlu0 %2422
        %v2440 = vmul.f32 %v2360, %v2393
        %v2441 = vmul.f32 %v2361, %v2395
        %v2442 = vmul.f32 %v2362, %v2397
        %v2443 = vmul.f32 %v2363, %v2399
        %v2444 = vmul.f32 %v2364, %v2401
        %v2445 = vmul.f32 %v2365, %v2403
        %v2446 = vmul.f32 %v2366, %v2405
        %v2447 = vmul.f32 %v2367, %v2407
        %v2448 = vmul.f32 %v2368, %v2409
        %v2449 = vmul.f32 %v2369, %v2411
        %v2450 = vmul.f32 %v2370, %v2413
        %v2451 = vmul.f32 %v2371, %v2415
        %v2452 = vmul.f32 %v2372, %v2417
        %v2453 = vmul.f32 %v2373, %v2419
        %v2454 = vmul.f32 %v2374, %v2421
        %v2455 = vmul.f32 %v2375, %v2423
        %v2456 = vmul.f32 %v2008, %v257
        %v2457 = vmul.f32 %v2010, %v258
        %v2458 = vmul.f32 %v2012, %v259
        %v2459 = vmul.f32 %v2014, %v260
        %v2460 = vmul.f32 %v2016, %v261
        %v2461 = vmul.f32 %v2018, %v262
        %v2462 = vmul.f32 %v2020, %v263
        %v2463 = vmul.f32 %v2022, %v264
        %v2464 = vmul.f32 %v2024, %v265
        %v2465 = vmul.f32 %v2026, %v266
        %v2466 = vmul.f32 %v2028, %v267
        %v2467 = vmul.f32 %v2030, %v268
        %v2468 = vmul.f32 %v2032, %v269
        %v2469 = vmul.f32 %v2034, %v270
        %v2470 = vmul.f32 %v2036, %v271
        %v2471 = vmul.f32 %v2038, %v272
        %v2472 = vadd.f32 %v2440, %v2456
        %v2473 = vadd.f32 %v2441, %v2457
        %v2474 = vadd.f32 %v2442, %v2458
        %v2475 = vadd.f32 %v2443, %v2459
        %v2476 = vadd.f32 %v2444, %v2460
        %v2477 = vadd.f32 %v2445, %v2461
        %v2478 = vadd.f32 %v2446, %v2462
        %v2479 = vadd.f32 %v2447, %v2463
        %v2480 = vadd.f32 %v2448, %v2464
        %v2481 = vadd.f32 %v2449, %v2465
        %v2482 = vadd.f32 %v2450, %v2466
        %v2483 = vadd.f32 %v2451, %v2467
        %v2484 = vadd.f32 %v2452, %v2468
        %v2485 = vadd.f32 %v2453, %v2469
        %v2486 = vadd.f32 %v2454, %v2470
        %v2487 = vadd.f32 %v2455, %v2471
        %v2488 = vld [vmem:[%s2 + $0x210] sm:$0xf]
        %v2489 = vld [vmem:[%s2 + $0x218] sm:$0xf]
        %v2490 = vld [vmem:[%s2 + $0x220] sm:$0xf]
        %v2491 = vld [vmem:[%s2 + $0x228] sm:$0xf]
        %v2492 = vpack.c.bf16 %v2473, %v2472
        %v2493 = vpack.c.bf16 %v2475, %v2474
        %v2494 = vpack.c.bf16 %v2477, %v2476
        %v2495 = vpack.c.bf16 %v2479, %v2478
        %v2496 = vpack.c.bf16 %v2481, %v2480
        %v2497 = vpack.c.bf16 %v2483, %v2482
        %v2498 = vpack.c.bf16 %v2485, %v2484
        %v2499 = vpack.c.bf16 %v2487, %v2486
        %v2500 = vlaneseq
        %v2501 = vshrl.u32 %v2500, 7
        %v2502 = vsub.s32 4, %v2501
        %v2503 = vrot.slane %v273, %v2502
        %v2508 = vunpack.c.l.b16 %v2488
        %v2509 = vunpack.c.l.b16 %v2489
        %v2510 = vunpack.c.l.b16 %v2490
        %v2511 = vunpack.c.l.b16 %v2491
        %v2512 = vpack.c.b16 %v2509, %v2508
        %v2513 = vpack.c.b16 %v2511, %v2510
        %v2517 = vsel %vm1728, %v2492, 0
        %v2520 = vsel %vm1728, %v2493, 0
        %v2523 = vsel %vm1728, %v2494, 0
        %v2526 = vsel %vm1728, %v2495, 0
        %v2529 = vsel %vm1728, %v2496, 0
        %v2532 = vsel %vm1728, %v2497, 0
        %v2535 = vsel %vm1728, %v2498, 0
        %v2538 = vsel %vm1728, %v2499, 0
        %2540 = vmatprep.subr.bf16.mxu0 0
        %2541 = vmatpush1.bf16.msra.mxu0 %v2512
        %2542 = vmatprep.subr.bf16.mxu0 0
        %2543 = vmatpush1.bf16.msra.mxu0 %v2513
        %2544 = vmatprep.subr.bf16.mxu0 0
        %2545 = vmatpush1.bf16.msra.mxu0 0
        %2546 = vmatprep.subr.bf16.mxu0 0
        %2547 = vmatpush1.bf16.msra.mxu0 0
        %2548 = vmatprep.subr.bf16.mxu0 0
        %2549 = vmatpush1.bf16.msra.mxu0 0
        %2550 = vmatprep.subr.bf16.mxu0 0
        %2551 = vmatpush1.bf16.msra.mxu0 0
        %2552 = vmatprep.subr.bf16.mxu0 0
        %2553 = vmatpush1.bf16.msra.mxu0 0
        %2554 = vmatprep.subr.bf16.mxu0 0
        %2555 = vmatpush1.bf16.msra.mxu0 0
        %2556 = vmatprep.subr.bf16.mxu0 0
        %2557 = vmatpush1.bf16.msra.mxu0 0
        %2558 = vmatprep.subr.bf16.mxu0 0
        %2559 = vmatpush1.bf16.msra.mxu0 0
        %2560 = vmatprep.subr.bf16.mxu0 0
        %2561 = vmatpush1.bf16.msra.mxu0 0
        %2562 = vmatprep.subr.bf16.mxu0 0
        %2563 = vmatpush1.bf16.msra.mxu0 0
        %2564 = vmatprep.subr.bf16.mxu0 0
        %2565 = vmatpush1.bf16.msra.mxu0 0
        %2566 = vmatprep.subr.bf16.mxu0 0
        %2567 = vmatpush1.bf16.msra.mxu0 0
        %2568 = vmatprep.subr.bf16.mxu0 0
        %2569 = vmatpush1.bf16.msra.mxu0 0
        %2570 = vmatprep.subr.bf16.mxu0 0
        %2571 = vmatpush1.bf16.msra.mxu0 0
        %2572 = vmatprep.mubr.bf16.mxu0 0
        %2573 = vmatmul.mubr.bf16.gmra.mrb[0].mxu0 %v2517
        %v2574 = vpop.f32.mrb[0].mxu0
        %v2575 = vadd.f32 %v2503, %v2574
        %v2576 = vpop.f32.mrb[0].mxu0
        %v2577 = vpop.f32.mrb[0].mxu0
        %v2578 = vadd.f32 %v2503, %v2577
        %v2579 = vpop.f32.mrb[0].mxu0
        %2580 = vmatprep.mubr.bf16.mxu0 0
        %2581 = vmatmul.mubr.bf16.gmra.mrb[0].mxu0 %v2520
        %v2582 = vpop.f32.mrb[0].mxu0
        %v2583 = vadd.f32 %v2503, %v2582
        %v2584 = vpop.f32.mrb[0].mxu0
        %v2585 = vpop.f32.mrb[0].mxu0
        %v2586 = vadd.f32 %v2503, %v2585
        %v2587 = vpop.f32.mrb[0].mxu0
        %2588 = vmatprep.mubr.bf16.mxu0 0
        %2589 = vmatmul.mubr.bf16.gmra.mrb[0].mxu0 %v2523
        %v2590 = vpop.f32.mrb[0].mxu0
        %v2591 = vadd.f32 %v2503, %v2590
        %v2592 = vpop.f32.mrb[0].mxu0
        %v2593 = vpop.f32.mrb[0].mxu0
        %v2594 = vadd.f32 %v2503, %v2593
        %v2595 = vpop.f32.mrb[0].mxu0
        %2596 = vmatprep.mubr.bf16.mxu0 0
        %2597 = vmatmul.mubr.bf16.gmra.mrb[0].mxu0 %v2526
        %v2598 = vpop.f32.mrb[0].mxu0
        %v2599 = vadd.f32 %v2503, %v2598
        %v2600 = vpop.f32.mrb[0].mxu0
        %v2601 = vpop.f32.mrb[0].mxu0
        %v2602 = vadd.f32 %v2503, %v2601
        %v2603 = vpop.f32.mrb[0].mxu0
        %2604 = vmatprep.mubr.bf16.mxu0 0
        %2605 = vmatmul.mubr.bf16.gmra.mrb[0].mxu0 %v2529
        %v2606 = vpop.f32.mrb[0].mxu0
        %v2607 = vadd.f32 %v2503, %v2606
        %v2608 = vpop.f32.mrb[0].mxu0
        %v2609 = vpop.f32.mrb[0].mxu0
        %v2610 = vadd.f32 %v2503, %v2609
        %v2611 = vpop.f32.mrb[0].mxu0
        %2612 = vmatprep.mubr.bf16.mxu0 0
        %2613 = vmatmul.mubr.bf16.gmra.mrb[0].mxu0 %v2532
        %v2614 = vpop.f32.mrb[0].mxu0
        %v2615 = vadd.f32 %v2503, %v2614
        %v2616 = vpop.f32.mrb[0].mxu0
        %v2617 = vpop.f32.mrb[0].mxu0
        %v2618 = vadd.f32 %v2503, %v2617
        %v2619 = vpop.f32.mrb[0].mxu0
        %2620 = vmatprep.mubr.bf16.mxu0 0
        %2621 = vmatmul.mubr.bf16.gmra.mrb[0].mxu0 %v2535
        %v2622 = vpop.f32.mrb[0].mxu0
        %v2623 = vadd.f32 %v2503, %v2622
        %v2624 = vpop.f32.mrb[0].mxu0
        %v2625 = vpop.f32.mrb[0].mxu0
        %v2626 = vadd.f32 %v2503, %v2625
        %v2627 = vpop.f32.mrb[0].mxu0
        %2628 = vmatprep.mubr.bf16.mxu0 0
        %2629 = vmatmul.mubr.bf16.gmra.mrb[0].mxu0 %v2538
        %v2630 = vpop.f32.mrb[0].mxu0
        %v2631 = vadd.f32 %v2503, %v2630
        %v2632 = vpop.f32.mrb[0].mxu0
        %v2633 = vpop.f32.mrb[0].mxu0
        %v2634 = vadd.f32 %v2503, %v2633
        %v2635 = vpop.f32.mrb[0].mxu0
        %2636 = vdwg.mxu0
        %2653 = vrot.lane.b32.xlu0 %v2575, 32
        %v2654 = vpop.permute.xlu0 %2653
        %2655 = vrot.lane.b32.xlu0 %v2578, 32
        %v2656 = vpop.permute.xlu0 %2655
        %2657 = vrot.lane.b32.xlu0 %v2583, 32
        %v2658 = vpop.permute.xlu0 %2657
        %2659 = vrot.lane.b32.xlu0 %v2586, 32
        %v2660 = vpop.permute.xlu0 %2659
        %2661 = vrot.lane.b32.xlu0 %v2591, 32
        %v2662 = vpop.permute.xlu0 %2661
        %2663 = vrot.lane.b32.xlu0 %v2594, 32
        %v2664 = vpop.permute.xlu0 %2663
        %2665 = vrot.lane.b32.xlu0 %v2599, 32
        %v2666 = vpop.permute.xlu0 %2665
        %2667 = vrot.lane.b32.xlu0 %v2602, 32
        %v2668 = vpop.permute.xlu0 %2667
        %2669 = vrot.lane.b32.xlu0 %v2607, 32
        %v2670 = vpop.permute.xlu0 %2669
        %2671 = vrot.lane.b32.xlu0 %v2610, 32
        %v2672 = vpop.permute.xlu0 %2671
        %2673 = vrot.lane.b32.xlu0 %v2615, 32
        %v2674 = vpop.permute.xlu0 %2673
        %2675 = vrot.lane.b32.xlu0 %v2618, 32
        %v2676 = vpop.permute.xlu0 %2675
        %2677 = vrot.lane.b32.xlu0 %v2623, 32
        %v2678 = vpop.permute.xlu0 %2677
        %2679 = vrot.lane.b32.xlu0 %v2626, 32
        %v2680 = vpop.permute.xlu0 %2679
        %2681 = vrot.lane.b32.xlu0 %v2631, 32
        %v2682 = vpop.permute.xlu0 %2681
        %2683 = vrot.lane.b32.xlu0 %v2634, 32
        %v2684 = vpop.permute.xlu0 %2683
        %v2701 = vsel %vm1728, %v2472, %v2654
        %v2702 = vsel %vm1728, %v2473, %v2656
        %v2703 = vsel %vm1728, %v2474, %v2658
        %v2704 = vsel %vm1728, %v2475, %v2660
        %v2705 = vsel %vm1728, %v2476, %v2662
        %v2706 = vsel %vm1728, %v2477, %v2664
        %v2707 = vsel %vm1728, %v2478, %v2666
        %v2708 = vsel %vm1728, %v2479, %v2668
        %v2709 = vsel %vm1728, %v2480, %v2670
        %v2710 = vsel %vm1728, %v2481, %v2672
        %v2711 = vsel %vm1728, %v2482, %v2674
        %v2712 = vsel %vm1728, %v2483, %v2676
        %v2713 = vsel %vm1728, %v2484, %v2678
        %v2714 = vsel %vm1728, %v2485, %v2680
        %v2715 = vsel %vm1728, %v2486, %v2682
        %v2716 = vsel %vm1728, %v2487, %v2684
        %2717 = vst [vmem:[%s209] sm:$0xff] %v2701
        %2718 = vst [vmem:[%s209 + $0x8] sm:$0xff] %v2702
        %2719 = vst [vmem:[%s209 + $0x10] sm:$0xff] %v2703
        %2720 = vst [vmem:[%s209 + $0x18] sm:$0xff] %v2704
        %2721 = vst [vmem:[%s209 + $0x20] sm:$0xff] %v2705
        %2722 = vst [vmem:[%s209 + $0x28] sm:$0xff] %v2706
        %2723 = vst [vmem:[%s209 + $0x30] sm:$0xff] %v2707
        %2724 = vst [vmem:[%s209 + $0x38] sm:$0xff] %v2708
        %2725 = vst [vmem:[%s209 + $0x40] sm:$0xff] %v2709
        %2726 = vst [vmem:[%s209 + $0x48] sm:$0xff] %v2710
        %2727 = vst [vmem:[%s209 + $0x50] sm:$0xff] %v2711
        %2728 = vst [vmem:[%s209 + $0x58] sm:$0xff] %v2712
        %2729 = vst [vmem:[%s209 + $0x60] sm:$0xff] %v2713
        %2730 = vst [vmem:[%s209 + $0x68] sm:$0xff] %v2714
        %2731 = vst [vmem:[%s209 + $0x70] sm:$0xff] %v2715
        %2732 = vst [vmem:[%s209 + $0x78] sm:$0xff] %v2716
        %s2733 = sand.u32 %s120, 1
        %s2734 = scalar_lea.sflag [#allocation3], %s2733
        %s2735 = sand.u32 %s120, 1
        %s2736 = smul.addr %s2735, 128
        %s2737 = scalar_lea.vmem [#allocation2], %s2736
        // Predicated region
        $region37: #{tpu_custom_call.1} parent=35 // pred_check
          %p2738 = pneg %p130
        $region38: #{tpu_custom_call.1} parent=35 // pred_check_branch
          %2740 = sbr.rel (%p2738) target = $region40
        $region39: #{tpu_custom_call.1} parent=35 // pred_region
          %s2741 = smul.u32 16, %s18
          %s2743 = ssub.s32 2048, 2048
          %2744 = vsyncadd %s2734, %s2743
          %s2745 = smul.addr %s2741, 128
          %s2746 = scalar_lea.hbm %s4, %s2745
          %s2747 = sshll.u32 %s2737, 4
          %s2748 = int_to_ptr.vmem [resolvable:$true] %s2747
          %2753 = dma.vmem_to_hbm [thread:$0]  %s2748, 2048, %s2746, %s2734, 128, 128, 8
        $region40: #{tpu_custom_call.1} parent=35 // pred_fallthru
          _
      $region36: #{tpu_custom_call.1} parent=5 // pred_fallthru
        _
      %p2754 = scmp.le.s32.totalorder 2, %s13
      // Predicated region
      $region41: #{tpu_custom_call.1} parent=5 // pred_check
        %p2755 = pneg %p2754
      $region42: #{tpu_custom_call.1} parent=5 // pred_check_branch
        %2757 = sbr.rel (%p2755) target = $region44
      $region43: #{tpu_custom_call.1} parent=5 // pred_region
        %s2758 = ssub.s32 %s13, 2
        // Predicated region
        $region45: #{tpu_custom_call.1} parent=43 // pred_check
          %p2759 = pneg %p136
        $region46: #{tpu_custom_call.1} parent=43 // pred_check_branch
          %2761 = sbr.rel (%p2759) target = $region48
        $region47: #{tpu_custom_call.1} parent=43 // pred_region
          %s2762 = sand.u32 %s121, 1
          %s2763 = scalar_lea.sflag [#allocation3], %s2762
          %s2764 = sand.u32 %s121, 1
          %s2765 = smul.addr %s2764, 128
          %s2766 = scalar_lea.vmem [#allocation2], %s2765
          %2767 = dma.done %s2763, 2048
        $region48: #{tpu_custom_call.1} parent=43 // pred_fallthru
          _
      $region44: #{tpu_custom_call.1} parent=5 // pred_fallthru
        _
    $region6: #{tpu_custom_call.1} parent=1 // loop_footer
      %s17 = sadd.s32 1, %s13
    $region7: #{tpu_custom_call.1} parent=1 // loop_footer_branch
      %12 = sbr.rel target = $region3
    $region8: #{tpu_custom_call.1} parent=1 // loop_exit
      _
    %2768 = vsyncpa [#allocation3], 1
    %s2769 = scalar_lea.sflag [#allocation3], 1
    %2770 = vsyncpa %s2769, 1

</llo_original>
